<compile_context>
chip_gen: v7x
topology: tpu7x:2x2x1
jax: 0.10.0
libtpu: 0.0.40
codegen_flags: <defaults>
</compile_context>

<pallas_src>
import jax
import jax.numpy as jnp
from jax.experimental import pallas as pl
from jax.experimental.pallas import tpu as pltpu

_NEG = -1e30  # additive mask for invalid (tail) conv positions


def _round_up(x, m):
    return ((x + m - 1) // m) * m


def _make_cnn_kernel(max_fs, l_r, head_len):
    """Build the kernel with static window / pooling structure closed over."""
    tail_len = l_r - head_len

    def kernel(ids_ref, table_ref, wconv_ref, bconv_ref, tmask_ref,
               fcw_ref, fcb_ref, out_ref):
        # ids_ref  : [TB, S_pad]      int32  (token ids, pad token past seq end)
        # table_ref: [V_PAD, E]       bf16   (embedding table, VMEM resident)
        # wconv_ref: [K, NF_PAD]      bf16   (K = max_fs*E; all filters stacked)
        # bconv_ref: [1, NF_PAD]      f32
        # tmask_ref: [tail_len, NF_PAD] f32  (0 = valid, -1e30 = invalid)
        # fcw_ref  : [NF_PAD, OUT_PAD] bf16
        # fcb_ref  : [1, OUT_PAD]     f32
        # out_ref  : [TB, OUT_PAD]    bf16
        tb, s_pad = ids_ref.shape
        v_pad, e = table_ref.shape
        k_dim, nf_pad = wconv_ref.shape

        # ---- fused embedding gather: one-hot built on the VPU, gather on the
        #      MXU against the VMEM-resident table.  Exact (single 1 per row).
        # TODO(synk): for large vocabularies (table >> VMEM) this one-hot MXU
        # gather should be replaced by a wrapper-side jnp.take or an in-kernel
        # DMA gather; only small-vocab configs take this fused path.
        ids3 = ids_ref[...].reshape(tb, s_pad, 1)
        iota = jax.lax.broadcasted_iota(jnp.int32, (tb, s_pad, v_pad), 2)
        onehot = (ids3 == iota).astype(jnp.bfloat16)          # [TB, S_pad, V_PAD]
        emb = jnp.dot(onehot.reshape(tb * s_pad, v_pad), table_ref[...],
                      preferred_element_type=jnp.float32)      # [TB*S_pad, E]
        emb = emb.astype(jnp.bfloat16).reshape(tb, s_pad, e)

        # ---- im2col as a value (no VMEM scratch, no masked stores):
        #      lane-concat the max_fs shifted E-wide windows into K=128 rows.
        col = jnp.concatenate(
            [emb[:, k:k + l_r, :] for k in range(max_fs)], axis=-1)
        col = col.reshape(tb * l_r, k_dim)                     # [TB*L, K]

        # ---- single fused conv matmul for ALL filter sizes + bias + ReLU.
        acc = jnp.dot(col, wconv_ref[...], preferred_element_type=jnp.float32)
        acc = jnp.maximum(acc + bconv_ref[...], 0.0)
        acc = acc.reshape(tb, l_r, nf_pad)                     # [TB, L, NF_PAD]

        # ---- max-pool over time: unmasked head + additively (-1e30) masked tail.
        pooled = jnp.max(acc[:, :head_len, :], axis=1)         # [TB, NF_PAD]
        if tail_len > 0:
            tail = acc[:, head_len:, :] + tmask_ref[...]       # [TB, tail, NF_PAD]
            pooled = jnp.maximum(pooled, jnp.max(tail, axis=1))

        # TODO(synk): dropout is eval-mode identity here; training-mode masking
        # would use pltpu.prng_seed / pltpu.prng_random_bits.
        logits = jnp.dot(pooled.astype(fcw_ref.dtype), fcw_ref[...],
                         preferred_element_type=jnp.float32) + fcb_ref[...]
        out_ref[...] = logits.astype(out_ref.dtype)

    return kernel


def cnn_forward(text, emb_table, conv_params, fc_w, fc_b,
                filter_sizes, n_filters, output_dim, *, pad_idx=0,
                batch_tile=128):
    """text: [S, B] int32 token ids (PyTorch seq-first convention)."""
    ids = text.T.astype(jnp.int32)                              # permute(1,0) -> [B, S]
    B, S = ids.shape
    V, E = emb_table.shape

    filter_sizes = tuple(filter_sizes)
    max_fs = max(filter_sizes)
    assert S >= max_fs, "sequence must be at least as long as the largest filter"
    F = n_filters
    NF = len(filter_sizes) * F
    NF_PAD = _round_up(NF, 128)
    OUT_PAD = _round_up(output_dim, 128)
    V_PAD = _round_up(V, 128)
    K = max_fs * E

    # Conv positions per example rounded up so every in-kernel reshape is
    # sublane (8) aligned; only the first `head_len` positions are valid for
    # every filter, the rest are masked additively in the pooling step.
    L_r = _round_up(S, 8)
    head_len = S - max_fs + 1
    tail_len = L_r - head_len
    S_pad_r = _round_up(L_r + max_fs - 1, 8)      # embedding positions gathered

    # ---- batch tiling: VMEM-budgeted, multiple of 16 (bf16 out tile), and
    #      always >= 2 grid steps so megacore / v7x dual-TC gets both cores.
    per_row_bytes = (S_pad_r * V_PAD * 2           # one-hot (bf16)
                     + S_pad_r * E * 6             # gathered emb (f32 + bf16)
                     + L_r * K * 4                 # im2col windows + concat
                     + L_r * NF_PAD * 8)           # conv acc + relu (f32)
    budget = 24 << 20                              # live-value budget (fits v7x)
    TB = min(batch_tile, max(16, budget // max(per_row_bytes, 1)))
    TB = max(16, (TB // 16) * 16)
    TB = min(TB, max(16, _round_up(pl.cdiv(B, 2), 16)))
    n_blk = max(2, pl.cdiv(B, TB))
    B_pad = n_blk * TB

    # Single merged pad (batch + sequence) on the tiny int32 ids only.
    ids = jnp.pad(ids, ((0, B_pad - B), (0, S_pad_r - S)),
                  constant_values=pad_idx)

    # Embedding table, padded & bf16 (kept VMEM resident by the kernel).
    table = jnp.zeros((V_PAD, E), jnp.float32).at[:V].set(emb_table)
    table = table.astype(jnp.bfloat16)

    # Stack/pad all conv weights into one [K, NF_PAD] matrix, biases into
    # [1, NF_PAD]; build the additive tail mask [tail_len, NF_PAD].
    w_stk = jnp.zeros((K, NF_PAD), jnp.float32)
    b_stk = jnp.zeros((1, NF_PAD), jnp.float32)
    tmask = jnp.full((max(tail_len, 1), NF_PAD), _NEG, jnp.float32)
    for i, (fs, (w, b)) in enumerate(zip(filter_sizes, conv_params)):
        w_stk = w_stk.at[:fs * E, i * F:(i + 1) * F].set(w.reshape(fs * E, F))
        b_stk = b_stk.at[:, i * F:(i + 1) * F].set(b.reshape(1, F))
        n_valid_tail = max(0, min(tail_len, (S - fs + 1) - head_len))
        if n_valid_tail > 0:
            tmask = tmask.at[:n_valid_tail, i * F:(i + 1) * F].set(0.0)
    fcw_p = jnp.zeros((NF_PAD, OUT_PAD), jnp.float32)
    fcw_p = fcw_p.at[:NF, :output_dim].set(fc_w)
    fcb_p = jnp.zeros((1, OUT_PAD), jnp.float32)
    fcb_p = fcb_p.at[:, :output_dim].set(fc_b.reshape(1, -1))
    w_stk = w_stk.astype(jnp.bfloat16)
    fcw_p = fcw_p.astype(jnp.bfloat16)

    flops = (2 * B_pad * S_pad_r * V_PAD * E          # one-hot gather matmul
             + 2 * B_pad * L_r * K * NF_PAD           # fused conv matmul
             + 2 * B_pad * NF_PAD * OUT_PAD)          # fc matmul
    bytes_accessed = (ids.size * 4 + table.size * 2 + w_stk.size * 2
                      + b_stk.size * 4 + tmask.size * 4 + fcw_p.size * 2
                      + fcb_p.size * 4 + B_pad * OUT_PAD * 2)

    kernel = _make_cnn_kernel(max_fs, L_r, head_len)

    out = pl.pallas_call(
        kernel,
        out_shape=jax.ShapeDtypeStruct((B_pad, OUT_PAD), jnp.bfloat16),
        grid=(n_blk,),
        in_specs=[
            pl.BlockSpec((TB, S_pad_r), lambda i: (i, 0)),              # token ids
            pl.BlockSpec((V_PAD, E), lambda i: (0, 0)),                 # emb table
            pl.BlockSpec((K, NF_PAD), lambda i: (0, 0)),                # conv W
            pl.BlockSpec((1, NF_PAD), lambda i: (0, 0)),                # conv b
            pl.BlockSpec((max(tail_len, 1), NF_PAD), lambda i: (0, 0)),  # tail mask
            pl.BlockSpec((NF_PAD, OUT_PAD), lambda i: (0, 0)),          # fc W
            pl.BlockSpec((1, OUT_PAD), lambda i: (0, 0)),               # fc b
        ],
        out_specs=pl.BlockSpec((TB, OUT_PAD), lambda i: (i, 0)),
        compiler_params=pltpu.CompilerParams(
            dimension_semantics=("parallel",),
            vmem_limit_bytes=48 << 20),
        cost_estimate=pl.CostEstimate(flops=flops, transcendentals=0,
                                      bytes_accessed=bytes_accessed),
    )(ids, table, w_stk, b_stk, tmask, fcw_p, fcb_p)

    return out[:B, :output_dim].astype(jnp.float32)


def reference_forward(text, emb_table, conv_params, fc_w, fc_b):
    """Pure-JAX f32 reference matching the PyTorch forward."""
    ids = text.T
    embedded = jnp.take(emb_table, ids, axis=0)                 # [B, S, E]
    B, S, _ = embedded.shape
    pooled = []
    for (w, b) in conv_params:
        fs, _, F = w.shape
        L = S - fs + 1
        acc = jnp.zeros((B, L, F), jnp.float32)
        for k in range(fs):
            acc = acc + jnp.einsum("ble,ef->blf", embedded[:, k:k + L, :], w[k])
        acc = jax.nn.relu(acc + b)
        pooled.append(jnp.max(acc, axis=1))
    cat = jnp.concatenate(pooled, axis=-1)
    return cat @ fc_w + fc_b


if __name__ == "__main__":
    # Small, deterministic config consistent with the module's __init__.
    vocab_size = 50
    embedding_dim = 32
    n_filters = 16
    filter_sizes = (2, 3, 4)
    output_dim = 2
    pad_idx = 0
    seq_len = 8
    batch = 2

    key = jax.random.PRNGKey(0)
    k_emb, k_text, k_fc, *k_convs = jax.random.split(key, 3 + len(filter_sizes))

    # Embedding table; padding_idx row zeroed (as nn.Embedding(padding_idx=...)).
    emb_table = 0.1 * jax.random.normal(k_emb, (vocab_size, embedding_dim),
                                        jnp.float32)
    emb_table = emb_table.at[pad_idx].set(0.0)

    # Conv2d(in=1, out=n_filters, kernel=(fs, E)) weights, stored as [fs, E, F]
    # (transposed from PyTorch's [F, 1, fs, E]); bias stored as [1, F].
    conv_params = []
    for fs, kc in zip(filter_sizes, k_convs):
        kw, kb = jax.random.split(kc)
        w = 0.1 * jax.random.normal(kw, (fs, embedding_dim, n_filters),
                                    jnp.float32)
        b = 0.1 * jax.random.normal(kb, (1, n_filters), jnp.float32)
        conv_params.append((w, b))

    # Linear(len(filter_sizes)*n_filters, output_dim): weight stored [in, out].
    kfw, kfb = jax.random.split(k_fc)
    fc_w = 0.1 * jax.random.normal(
        kfw, (len(filter_sizes) * n_filters, output_dim), jnp.float32)
    fc_b = 0.1 * jax.random.normal(kfb, (1, output_dim), jnp.float32)

    # Input token ids: [seq_len, batch], as PyTorch text (seq-first).
    text = jax.random.randint(k_text, (seq_len, batch), 0, vocab_size,
                              dtype=jnp.int32)

    out = cnn_forward(text, emb_table, conv_params, fc_w, fc_b,
                      filter_sizes, n_filters, output_dim, pad_idx=pad_idx)
    out = jax.block_until_ready(out)

    ref = reference_forward(text, emb_table, conv_params, fc_w, fc_b)
    assert out.shape == (batch, output_dim)
    # bf16 MXU inputs / bf16 logits (f32 accumulation) => loose tol vs f32 ref.
    assert jnp.allclose(out, ref, rtol=1e-2, atol=1e-2), (out, ref)

    print("KERNEL_OK")
</pallas_src>

<mosaic_0001>
module attributes {stable_mosaic.version = 11 : i64} {
  func.func @kernel(%arg0: i32, %arg1: memref<16x16xi32, #tpu.memory_space<vmem>>, %arg2: memref<128x32xbf16, #tpu.memory_space<vmem>>, %arg3: memref<128x128xbf16, #tpu.memory_space<vmem>>, %arg4: memref<1x128xf32, #tpu.memory_space<vmem>>, %arg5: memref<3x128xf32, #tpu.memory_space<vmem>>, %arg6: memref<128x128xbf16, #tpu.memory_space<vmem>>, %arg7: memref<1x128xf32, #tpu.memory_space<vmem>>, %arg8: memref<16x128xbf16, #tpu.memory_space<vmem>>) attributes {dimension_semantics = [#tpu.dimension_semantics<parallel>], iteration_bounds = array<i64: 2>, scalar_prefetch = 0 : i64, scratch_operands = 0 : i64, tpu.core_type = #tpu.core_type<tc>, window_params = [{transform_indices = @transform_0, window_bounds = array<i64: 16, 16>}, {pipeline_mode = #tpu.pipeline_mode<synchronous>, transform_indices = @transform_1, window_bounds = array<i64: 128, 32>}, {pipeline_mode = #tpu.pipeline_mode<synchronous>, transform_indices = @transform_2, window_bounds = array<i64: 128, 128>}, {pipeline_mode = #tpu.pipeline_mode<synchronous>, transform_indices = @transform_3, window_bounds = array<i64: 1, 128>}, {pipeline_mode = #tpu.pipeline_mode<synchronous>, transform_indices = @transform_4, window_bounds = array<i64: 3, 128>}, {pipeline_mode = #tpu.pipeline_mode<synchronous>, transform_indices = @transform_5, window_bounds = array<i64: 128, 128>}, {pipeline_mode = #tpu.pipeline_mode<synchronous>, transform_indices = @transform_6, window_bounds = array<i64: 1, 128>}, {transform_indices = @transform_7, window_bounds = array<i64: 16, 128>}]} {
    %c0 = arith.constant 0 : index
    %c0_0 = arith.constant 0 : index
    %0 = vector.load %arg1[%c0, %c0_0] : memref<16x16xi32, #tpu.memory_space<vmem>>, vector<16x16xi32>
    %1 = vector.shape_cast %0 : vector<16x16xi32> to vector<16x16x1xi32>
    %2 = tpu.iota {dimensions = array<i32: 2>} : vector<16x16x128xi32>
    %3 = vector.broadcast %1 : vector<16x16x1xi32> to vector<16x16x128xi32>
    %4 = arith.cmpi eq, %3, %2 : vector<16x16x128xi32>
    %5 = arith.extui %4 : vector<16x16x128xi1> to vector<16x16x128xi32>
    %6 = arith.sitofp %5 : vector<16x16x128xi32> to vector<16x16x128xf32>
    %7 = arith.truncf %6 : vector<16x16x128xf32> to vector<16x16x128xbf16>
    %8 = vector.shape_cast %7 : vector<16x16x128xbf16> to vector<256x128xbf16>
    %c0_1 = arith.constant 0 : index
    %c0_2 = arith.constant 0 : index
    %9 = vector.load %arg2[%c0_1, %c0_2] : memref<128x32xbf16, #tpu.memory_space<vmem>>, vector<128x32xbf16>
    %cst = arith.constant dense<0.000000e+00> : vector<256x32xf32>
    %10 = tpu.matmul %8, %9, %cst {dimension_numbers = #tpu.dot_dimension_numbers<[1], [0], [0], [1], [0, 0, 1, 1], [], []>} : vector<256x128xbf16>, vector<128x32xbf16>, vector<256x32xf32> -> vector<256x32xf32>
    %11 = arith.truncf %10 : vector<256x32xf32> to vector<256x32xbf16>
    %12 = vector.shape_cast %11 : vector<256x32xbf16> to vector<16x16x32xbf16>
    %13 = vector.extract_strided_slice %12 {offsets = [0, 0, 0], sizes = [16, 8, 32], strides = [1, 1, 1]} : vector<16x16x32xbf16> to vector<16x8x32xbf16>
    %14 = vector.extract_strided_slice %12 {offsets = [0, 1, 0], sizes = [16, 8, 32], strides = [1, 1, 1]} : vector<16x16x32xbf16> to vector<16x8x32xbf16>
    %15 = vector.extract_strided_slice %12 {offsets = [0, 2, 0], sizes = [16, 8, 32], strides = [1, 1, 1]} : vector<16x16x32xbf16> to vector<16x8x32xbf16>
    %16 = vector.extract_strided_slice %12 {offsets = [0, 3, 0], sizes = [16, 8, 32], strides = [1, 1, 1]} : vector<16x16x32xbf16> to vector<16x8x32xbf16>
    %17 = tpu.concatenate %13, %14, %15, %16 in 2 : vector<16x8x32xbf16>, vector<16x8x32xbf16>, vector<16x8x32xbf16>, vector<16x8x32xbf16> -> vector<16x8x128xbf16>
    %18 = vector.shape_cast %17 : vector<16x8x128xbf16> to vector<128x128xbf16>
    %c0_3 = arith.constant 0 : index
    %c0_4 = arith.constant 0 : index
    %19 = vector.load %arg3[%c0_3, %c0_4] : memref<128x128xbf16, #tpu.memory_space<vmem>>, vector<128x128xbf16>
    %cst_5 = arith.constant dense<0.000000e+00> : vector<128x128xf32>
    %20 = tpu.matmul %18, %19, %cst_5 {dimension_numbers = #tpu.dot_dimension_numbers<[1], [0], [0], [1], [0, 0, 1, 1], [], []>} : vector<128x128xbf16>, vector<128x128xbf16>, vector<128x128xf32> -> vector<128x128xf32>
    %c0_6 = arith.constant 0 : index
    %c0_7 = arith.constant 0 : index
    %21 = vector.load %arg4[%c0_6, %c0_7] : memref<1x128xf32, #tpu.memory_space<vmem>>, vector<1x128xf32>
    %22 = vector.broadcast %21 : vector<1x128xf32> to vector<128x128xf32>
    %23 = arith.addf %20, %22 : vector<128x128xf32>
    %cst_8 = arith.constant 0.000000e+00 : f32
    %24 = vector.broadcast %cst_8 : f32 to vector<128x128xf32>
    %25 = arith.maximumf %23, %24 : vector<128x128xf32>
    %26 = vector.shape_cast %25 : vector<128x128xf32> to vector<16x8x128xf32>
    %27 = vector.extract_strided_slice %26 {offsets = [0, 0, 0], sizes = [16, 5, 128], strides = [1, 1, 1]} : vector<16x8x128xf32> to vector<16x5x128xf32>
    %cst_9 = arith.constant dense<0xFF800000> : vector<16x128xf32>
    %28 = vector.multi_reduction <maximumf>, %27, %cst_9 [1] : vector<16x5x128xf32> to vector<16x128xf32>
    %29 = vector.extract_strided_slice %26 {offsets = [0, 5, 0], sizes = [16, 3, 128], strides = [1, 1, 1]} : vector<16x8x128xf32> to vector<16x3x128xf32>
    %c0_10 = arith.constant 0 : index
    %c0_11 = arith.constant 0 : index
    %30 = vector.load %arg5[%c0_10, %c0_11] : memref<3x128xf32, #tpu.memory_space<vmem>>, vector<3x128xf32>
    %31 = vector.shape_cast %30 : vector<3x128xf32> to vector<1x3x128xf32>
    %32 = vector.broadcast %31 : vector<1x3x128xf32> to vector<16x3x128xf32>
    %33 = arith.addf %29, %32 : vector<16x3x128xf32>
    %cst_12 = arith.constant dense<0xFF800000> : vector<16x128xf32>
    %34 = vector.multi_reduction <maximumf>, %33, %cst_12 [1] : vector<16x3x128xf32> to vector<16x128xf32>
    %35 = arith.maximumf %28, %34 : vector<16x128xf32>
    %36 = arith.truncf %35 : vector<16x128xf32> to vector<16x128xbf16>
    %c0_13 = arith.constant 0 : index
    %c0_14 = arith.constant 0 : index
    %37 = vector.load %arg6[%c0_13, %c0_14] : memref<128x128xbf16, #tpu.memory_space<vmem>>, vector<128x128xbf16>
    %cst_15 = arith.constant dense<0.000000e+00> : vector<16x128xf32>
    %38 = tpu.matmul %36, %37, %cst_15 {dimension_numbers = #tpu.dot_dimension_numbers<[1], [0], [0], [1], [0, 0, 1, 1], [], []>} : vector<16x128xbf16>, vector<128x128xbf16>, vector<16x128xf32> -> vector<16x128xf32>
    %c0_16 = arith.constant 0 : index
    %c0_17 = arith.constant 0 : index
    %39 = vector.load %arg7[%c0_16, %c0_17] : memref<1x128xf32, #tpu.memory_space<vmem>>, vector<1x128xf32>
    %40 = vector.broadcast %39 : vector<1x128xf32> to vector<16x128xf32>
    %41 = arith.addf %38, %40 : vector<16x128xf32>
    %42 = arith.truncf %41 : vector<16x128xf32> to vector<16x128xbf16>
    %c0_18 = arith.constant 0 : index
    %c0_19 = arith.constant 0 : index
    %43 = vector.load %arg8[%c0_18, %c0_19] : memref<16x128xbf16, #tpu.memory_space<vmem>>, vector<16x128xbf16>
    tpu.vector_store %arg8[%c0_18, %c0_19], %42 {strides = array<i32>} : memref<16x128xbf16, #tpu.memory_space<vmem>>, vector<16x128xbf16>,
    return
  }
  func.func @transform_0(%arg0: i32) -> (i32, i32) {
    %c0_i32 = arith.constant 0 : i32
    %c0_i32_0 = arith.constant 0 : i32
    return %arg0, %c0_i32 : i32, i32
  }
  func.func @transform_1(%arg0: i32) -> (i32, i32) {
    %c0_i32 = arith.constant 0 : i32
    %c0_i32_0 = arith.constant 0 : i32
    %c0_i32_1 = arith.constant 0 : i32
    return %c0_i32, %c0_i32_0 : i32, i32
  }
  func.func @transform_2(%arg0: i32) -> (i32, i32) {
    %c0_i32 = arith.constant 0 : i32
    %c0_i32_0 = arith.constant 0 : i32
    %c0_i32_1 = arith.constant 0 : i32
    return %c0_i32, %c0_i32_0 : i32, i32
  }
  func.func @transform_3(%arg0: i32) -> (i32, i32) {
    %c0_i32 = arith.constant 0 : i32
    %c0_i32_0 = arith.constant 0 : i32
    %c0_i32_1 = arith.constant 0 : i32
    return %c0_i32, %c0_i32_0 : i32, i32
  }
  func.func @transform_4(%arg0: i32) -> (i32, i32) {
    %c0_i32 = arith.constant 0 : i32
    %c0_i32_0 = arith.constant 0 : i32
    %c0_i32_1 = arith.constant 0 : i32
    return %c0_i32, %c0_i32_0 : i32, i32
  }
  func.func @transform_5(%arg0: i32) -> (i32, i32) {
    %c0_i32 = arith.constant 0 : i32
    %c0_i32_0 = arith.constant 0 : i32
    %c0_i32_1 = arith.constant 0 : i32
    return %c0_i32, %c0_i32_0 : i32, i32
  }
  func.func @transform_6(%arg0: i32) -> (i32, i32) {
    %c0_i32 = arith.constant 0 : i32
    %c0_i32_0 = arith.constant 0 : i32
    %c0_i32_1 = arith.constant 0 : i32
    return %c0_i32, %c0_i32_0 : i32, i32
  }
  func.func @transform_7(%arg0: i32) -> (i32, i32) {
    %c0_i32 = arith.constant 0 : i32
    %c0_i32_0 = arith.constant 0 : i32
    return %arg0, %c0_i32 : i32, i32
  }
}

</mosaic_0001>

<llo_original>
// kernel: tpu_custom_call.1
$region0: #{tpu_custom_call.1}
  #allocation0 [shape = 'u32[]', space=smem, size = 0x4, offset = 0x4, fixed_abs, tag = 'smem constant byte address 0x4 - core index']
  #allocation1 [shape = 'u32[144,128]{1,0:T(1,128)}', space=vmem, size = 0x12000, scoped, tag = 'internal scratch']
  %s0 = inlined_call_operand.vmem [shape: s32[32,16], index: 0, kind: input, shape index: {}]
  %s1 = inlined_call_operand.vmem [shape: bf16[128,32], index: 1, kind: input, shape index: {}]
  %s2 = inlined_call_operand.vmem [shape: bf16[128,128], index: 2, kind: input, shape index: {}]
  %s3 = inlined_call_operand.vmem [shape: f32[1,128], index: 3, kind: input, shape index: {}]
  %s4 = inlined_call_operand.vmem [shape: f32[3,128], index: 4, kind: input, shape index: {}]
  %s5 = inlined_call_operand.vmem [shape: bf16[128,128], index: 5, kind: input, shape index: {}]
  %s6 = inlined_call_operand.vmem [shape: f32[1,128], index: 6, kind: input, shape index: {}]
  %s7 = inlined_call_operand.hbm [shape: bf16[32,128], index: 7, kind: output, shape index: {}]
  %s8 = sld [smem:[#allocation0]]
  $region61: #{tpu_custom_call.1} parent=0
    _
  %s10 = ssub.s32 1, %s8
  %s11 = scalar_select 0, %s10, %s8
  $region1: #{tpu_custom_call.1} parent=0
    #allocation2 [shape = 'u8[8192]{0}', space=vmem, size = 0x2000, scoped, tag = 'output window, operand 0']
    #allocation3 [shape = 's32[2]{0}', space=sflag, size = 0x8, scoped, tag = 'scoped memory for tpu_custom_call.1']
    %12 = vsyncpa [#allocation3], 0
    %s13 = scalar_lea.sflag [#allocation3], 1
    %14 = vsyncpa %s13, 0
    loop: start=0, step=1, limit=4
    $region2: #{tpu_custom_call.1} parent=1 // loop_pre_header
      _
    $region3: #{tpu_custom_call.1} parent=1 // loop_header
      %s16 = sphi 0, %s20
      %p17 = scmp.ge.s32.totalorder %s16, 4
      %s26 = sphi 0, %s28
      %s29 = sphi 0, %s26
      %s30 = sphi 0, %s29
      %s46 = sphi 0, %s30
      %s50 = sphi 0, %s50
      %s52 = sphi 0, %s50
      %s53 = sphi 0, %s52
      %s67 = sphi 0, %s53
      %s71 = sphi 0, %s71
      %s73 = sphi 0, %s71
      %s74 = sphi 0, %s73
      %s88 = sphi 0, %s74
      %s92 = sphi 0, %s92
      %s94 = sphi 0, %s92
      %s95 = sphi 0, %s94
      %s109 = sphi 0, %s95
      %s113 = sphi 0, %s113
      %s115 = sphi 0, %s113
      %s116 = sphi 0, %s115
      %s130 = sphi 0, %s116
      %s134 = sphi 0, %s134
      %s136 = sphi 0, %s134
      %s137 = sphi 0, %s136
      %s151 = sphi 0, %s137
      %s155 = sphi 0, %s155
      %s157 = sphi 0, %s155
      %s158 = sphi 0, %s157
      %s172 = sphi 0, %s158
      %s178 = sphi 0, %s180
      %s181 = sphi 0, %s178
      %s182 = sphi 0, %s181
      %s198 = sphi 0, %s182
    $region4: #{tpu_custom_call.1} parent=1 // loop_header_branch
      %19 = sbr.rel (%p17) target = $region8
    $region5: #{tpu_custom_call.1} parent=1 // loop_body
      %s21 = ssub.s32 %s16, 1
      %s22 = ssub.s32 %s16, 2
      %s23 = sadd.s32 %s16, 1
      %s24 = ssub.s32 %s16, %s23
      %p25 = scmp.eq.s32.totalorder %s24, 0
      %s27 = sadd.s32 %s26, 1
      %s28 = scalar_select %p25, %s26, %s27
      %p31 = pneg %p25
      %p32 = scmp.eq.s32.totalorder %s16, 1
      %p33 = por %p31, %p32
      %p34 = scmp.ne.s32.totalorder %s26, %s29
      %p35 = scmp.eq.s32.totalorder %s16, 0
      %p36 = por %p34, %p35
      %p37 = scmp.ne.s32.totalorder %s26, %s29
      %p38 = scmp.eq.s32.totalorder %s21, 1
      %p39 = por %p37, %p38
      %p40 = scmp.ne.s32.totalorder %s29, %s30
      %p41 = scmp.eq.s32.totalorder %s21, 0
      %p42 = por %p40, %p41
      %p43 = scmp.ne.s32.totalorder %s29, %s30
      %p44 = scmp.eq.s32.totalorder %s22, 1
      %p45 = por %p43, %p44
      %p47 = scmp.ne.s32.totalorder %s30, %s46
      %p48 = scmp.eq.s32.totalorder %s22, 0
      %p49 = por %p47, %p48
      %s51 = sadd.s32 %s50, 1
      %p54 = scmp.eq.s32.totalorder %s16, 1
      %p55 = scmp.ne.s32.totalorder %s50, %s52
      %p56 = scmp.eq.s32.totalorder %s16, 0
      %p57 = por %p55, %p56
      %p58 = scmp.ne.s32.totalorder %s50, %s52
      %p59 = scmp.eq.s32.totalorder %s21, 1
      %p60 = por %p58, %p59
      %p61 = scmp.ne.s32.totalorder %s52, %s53
      %p62 = scmp.eq.s32.totalorder %s21, 0
      %p63 = por %p61, %p62
      %p64 = scmp.ne.s32.totalorder %s52, %s53
      %p65 = scmp.eq.s32.totalorder %s22, 1
      %p66 = por %p64, %p65
      %p68 = scmp.ne.s32.totalorder %s53, %s67
      %p69 = scmp.eq.s32.totalorder %s22, 0
      %p70 = por %p68, %p69
      %s72 = sadd.s32 %s71, 1
      %p75 = scmp.eq.s32.totalorder %s16, 1
      %p76 = scmp.ne.s32.totalorder %s71, %s73
      %p77 = scmp.eq.s32.totalorder %s16, 0
      %p78 = por %p76, %p77
      %p79 = scmp.ne.s32.totalorder %s71, %s73
      %p80 = scmp.eq.s32.totalorder %s21, 1
      %p81 = por %p79, %p80
      %p82 = scmp.ne.s32.totalorder %s73, %s74
      %p83 = scmp.eq.s32.totalorder %s21, 0
      %p84 = por %p82, %p83
      %p85 = scmp.ne.s32.totalorder %s73, %s74
      %p86 = scmp.eq.s32.totalorder %s22, 1
      %p87 = por %p85, %p86
      %p89 = scmp.ne.s32.totalorder %s74, %s88
      %p90 = scmp.eq.s32.totalorder %s22, 0
      %p91 = por %p89, %p90
      %s93 = sadd.s32 %s92, 1
      %p96 = scmp.eq.s32.totalorder %s16, 1
      %p97 = scmp.ne.s32.totalorder %s92, %s94
      %p98 = scmp.eq.s32.totalorder %s16, 0
      %p99 = por %p97, %p98
      %p100 = scmp.ne.s32.totalorder %s92, %s94
      %p101 = scmp.eq.s32.totalorder %s21, 1
      %p102 = por %p100, %p101
      %p103 = scmp.ne.s32.totalorder %s94, %s95
      %p104 = scmp.eq.s32.totalorder %s21, 0
      %p105 = por %p103, %p104
      %p106 = scmp.ne.s32.totalorder %s94, %s95
      %p107 = scmp.eq.s32.totalorder %s22, 1
      %p108 = por %p106, %p107
      %p110 = scmp.ne.s32.totalorder %s95, %s109
      %p111 = scmp.eq.s32.totalorder %s22, 0
      %p112 = por %p110, %p111
      %s114 = sadd.s32 %s113, 1
      %p117 = scmp.eq.s32.totalorder %s16, 1
      %p118 = scmp.ne.s32.totalorder %s113, %s115
      %p119 = scmp.eq.s32.totalorder %s16, 0
      %p120 = por %p118, %p119
      %p121 = scmp.ne.s32.totalorder %s113, %s115
      %p122 = scmp.eq.s32.totalorder %s21, 1
      %p123 = por %p121, %p122
      %p124 = scmp.ne.s32.totalorder %s115, %s116
      %p125 = scmp.eq.s32.totalorder %s21, 0
      %p126 = por %p124, %p125
      %p127 = scmp.ne.s32.totalorder %s115, %s116
      %p128 = scmp.eq.s32.totalorder %s22, 1
      %p129 = por %p127, %p128
      %p131 = scmp.ne.s32.totalorder %s116, %s130
      %p132 = scmp.eq.s32.totalorder %s22, 0
      %p133 = por %p131, %p132
      %s135 = sadd.s32 %s134, 1
      %p138 = scmp.eq.s32.totalorder %s16, 1
      %p139 = scmp.ne.s32.totalorder %s134, %s136
      %p140 = scmp.eq.s32.totalorder %s16, 0
      %p141 = por %p139, %p140
      %p142 = scmp.ne.s32.totalorder %s134, %s136
      %p143 = scmp.eq.s32.totalorder %s21, 1
      %p144 = por %p142, %p143
      %p145 = scmp.ne.s32.totalorder %s136, %s137
      %p146 = scmp.eq.s32.totalorder %s21, 0
      %p147 = por %p145, %p146
      %p148 = scmp.ne.s32.totalorder %s136, %s137
      %p149 = scmp.eq.s32.totalorder %s22, 1
      %p150 = por %p148, %p149
      %p152 = scmp.ne.s32.totalorder %s137, %s151
      %p153 = scmp.eq.s32.totalorder %s22, 0
      %p154 = por %p152, %p153
      %s156 = sadd.s32 %s155, 1
      %p159 = scmp.eq.s32.totalorder %s16, 1
      %p160 = scmp.ne.s32.totalorder %s155, %s157
      %p161 = scmp.eq.s32.totalorder %s16, 0
      %p162 = por %p160, %p161
      %p163 = scmp.ne.s32.totalorder %s155, %s157
      %p164 = scmp.eq.s32.totalorder %s21, 1
      %p165 = por %p163, %p164
      %p166 = scmp.ne.s32.totalorder %s157, %s158
      %p167 = scmp.eq.s32.totalorder %s21, 0
      %p168 = por %p166, %p167
      %p169 = scmp.ne.s32.totalorder %s157, %s158
      %p170 = scmp.eq.s32.totalorder %s22, 1
      %p171 = por %p169, %p170
      %p173 = scmp.ne.s32.totalorder %s158, %s172
      %p174 = scmp.eq.s32.totalorder %s22, 0
      %p175 = por %p173, %p174
      %s176 = ssub.s32 %s16, %s23
      %p177 = scmp.eq.s32.totalorder %s176, 0
      %s179 = sadd.s32 %s178, 1
      %s180 = scalar_select %p177, %s178, %s179
      %p183 = pneg %p177
      %p184 = scmp.eq.s32.totalorder %s16, 1
      %p185 = por %p183, %p184
      %p186 = scmp.ne.s32.totalorder %s178, %s181
      %p187 = scmp.eq.s32.totalorder %s16, 0
      %p188 = por %p186, %p187
      %p189 = scmp.ne.s32.totalorder %s178, %s181
      %p190 = scmp.eq.s32.totalorder %s21, 1
      %p191 = por %p189, %p190
      %p192 = scmp.ne.s32.totalorder %s181, %s182
      %p193 = scmp.eq.s32.totalorder %s21, 0
      %p194 = por %p192, %p193
      %p195 = scmp.ne.s32.totalorder %s181, %s182
      %p196 = scmp.eq.s32.totalorder %s22, 1
      %p197 = por %p195, %p196
      %p199 = scmp.ne.s32.totalorder %s182, %s198
      %p200 = scmp.eq.s32.totalorder %s22, 0
      %p201 = por %p199, %p200
      %p202 = scmp.le.s32.totalorder 1, %s16
      %p203 = scmp.lt.s32.totalorder %s16, 3
      %p204 = pnand %p202, %p203
      %p205 = pneg %p204
      // Predicated region
      $region9: #{tpu_custom_call.1} parent=5 // pred_check
        _
      $region10: #{tpu_custom_call.1} parent=5 // pred_check_branch
        %207 = sbr.rel (%p204) target = $region12
      $region11: #{tpu_custom_call.1} parent=5 // pred_region
        %s208 = ssub.s32 %s16, 1
        // Predicated region
        $region13: #{tpu_custom_call.1} parent=11 // pred_check
          %p209 = pneg %p63
        $region14: #{tpu_custom_call.1} parent=11 // pred_check_branch
          %211 = sbr.rel (%p209) target = $region16
        $region15: #{tpu_custom_call.1} parent=11 // pred_region
          _
        $region16: #{tpu_custom_call.1} parent=11 // pred_fallthru
          _
        // Predicated region
        $region17: #{tpu_custom_call.1} parent=11 // pred_check
          %p212 = pneg %p84
        $region18: #{tpu_custom_call.1} parent=11 // pred_check_branch
          %214 = sbr.rel (%p212) target = $region20
        $region19: #{tpu_custom_call.1} parent=11 // pred_region
          _
        $region20: #{tpu_custom_call.1} parent=11 // pred_fallthru
          _
        // Predicated region
        $region21: #{tpu_custom_call.1} parent=11 // pred_check
          %p215 = pneg %p105
        $region22: #{tpu_custom_call.1} parent=11 // pred_check_branch
          %217 = sbr.rel (%p215) target = $region24
        $region23: #{tpu_custom_call.1} parent=11 // pred_region
          _
        $region24: #{tpu_custom_call.1} parent=11 // pred_fallthru
          _
        // Predicated region
        $region25: #{tpu_custom_call.1} parent=11 // pred_check
          %p218 = pneg %p126
        $region26: #{tpu_custom_call.1} parent=11 // pred_check_branch
          %220 = sbr.rel (%p218) target = $region28
        $region27: #{tpu_custom_call.1} parent=11 // pred_region
          _
        $region28: #{tpu_custom_call.1} parent=11 // pred_fallthru
          _
        // Predicated region
        $region29: #{tpu_custom_call.1} parent=11 // pred_check
          %p221 = pneg %p147
        $region30: #{tpu_custom_call.1} parent=11 // pred_check_branch
          %223 = sbr.rel (%p221) target = $region32
        $region31: #{tpu_custom_call.1} parent=11 // pred_region
          _
        $region32: #{tpu_custom_call.1} parent=11 // pred_fallthru
          _
        // Predicated region
        $region33: #{tpu_custom_call.1} parent=11 // pred_check
          %p224 = pneg %p168
        $region34: #{tpu_custom_call.1} parent=11 // pred_check_branch
          %226 = sbr.rel (%p224) target = $region36
        $region35: #{tpu_custom_call.1} parent=11 // pred_region
          _
        $region36: #{tpu_custom_call.1} parent=11 // pred_fallthru
          _
      $region12: #{tpu_custom_call.1} parent=5 // pred_fallthru
        _
      %p227 = scmp.lt.s32.totalorder %s16, 2
      // Predicated region
      $region37: #{tpu_custom_call.1} parent=5 // pred_check
        %p228 = pneg %p227
      $region38: #{tpu_custom_call.1} parent=5 // pred_check_branch
        %230 = sbr.rel (%p228) target = $region40
      $region39: #{tpu_custom_call.1} parent=5 // pred_region
        // Predicated region
        $region41: #{tpu_custom_call.1} parent=39 // pred_check
          %p231 = pneg %p36
        $region42: #{tpu_custom_call.1} parent=39 // pred_check_branch
          %233 = sbr.rel (%p231) target = $region44
        $region43: #{tpu_custom_call.1} parent=39 // pred_region
          %s234 = smul.u32 2, %s16
          %p235 = scmp.lt.s32.totalorder %s234, 3
          %s236 = scalar_select %p235, %s234, 3
          %s237 = smul.addr %s236, 8
          %s238 = scalar_lea.vmem %s0, %s237
          %s239 = smul.u32 2, %s16
        $region44: #{tpu_custom_call.1} parent=39 // pred_fallthru
          _
      $region40: #{tpu_custom_call.1} parent=5 // pred_fallthru
        _
      %p240 = scmp.le.s32.totalorder 1, %s16
      %p241 = scmp.lt.s32.totalorder %s16, 3
      %p242 = pnand %p240, %p241
      %p243 = pneg %p242
      // Predicated region
      $region45: #{tpu_custom_call.1} parent=5 // pred_check
        _
      $region46: #{tpu_custom_call.1} parent=5 // pred_check_branch
        %245 = sbr.rel (%p242) target = $region48
      $region47: #{tpu_custom_call.1} parent=5 // pred_region
        %s246 = ssub.s32 %s16, 1
        %s247 = smul.u32 2, %s21
        %p248 = scmp.lt.s32.totalorder %s247, 3
        %s249 = scalar_select %p248, %s247, 3
        %s250 = smul.addr %s249, 8
        %s251 = scalar_lea.vmem %s0, %s250
        %p252 = pneg %p42
        %p253 = pneg %p39
        %p254 = pneg %p63
        %p255 = pneg %p60
        %p256 = pneg %p84
        %p257 = pneg %p81
        %p258 = pneg %p105
        %p259 = pneg %p102
        %p260 = pneg %p126
        %p261 = pneg %p123
        %p262 = pneg %p147
        %p263 = pneg %p144
        %p264 = pneg %p168
        %p265 = pneg %p165
        %p266 = pneg %p194
        %p267 = pneg %p191
        %s268 = sand.u32 %s181, 1
        %s269 = scalar_lea.sflag [#allocation3], %s268
        %s270 = sand.u32 %s181, 1
        %s271 = smul.addr %s270, 8
        %s272 = scalar_lea.vmem [#allocation2], %s271
        %s273 = smul.u32 2, %s21
        %p274 = scmp.lt.s32.totalorder %s273, 3
        %s275 = scalar_select %p274, %s273, 3
        %s276 = smul.addr %s275, 8
        %s277 = scalar_lea.vmem %s0, %s276
        %s278 = smul.u32 2, %s21
        %s279 = smul.u32 2, %s21
        %v281 = vld [vmem:[%s277] sm:$0xff]
        %v282 = vld [vmem:[%s277 + $0x8] sm:$0xff]
        %v283 = vlaneseq
        %v284 = vshrl.u32 %v283, 7
        %v285 = vsub.s32 0, %v284
        %v286 = vrot.slane %v281, %v285
        %288 = vbcast.lane.b32.xlu0 %v286, 256
        %v289 = vpop.permute.xlu0 %288
        %s291 = sor.u32 256, 8
        %292 = vbcast.lane.b32.xlu0 %v286, %s291
        %v293 = vpop.permute.xlu0 %292
        %v294 = vlaneseq
        %v295 = vshrl.u32 %v294, 7
        %v296 = vsub.s32 1, %v295
        %v297 = vrot.slane %v281, %v296
        %299 = vbcast.lane.b32.xlu0 %v297, 256
        %v300 = vpop.permute.xlu0 %299
        %s302 = sor.u32 256, 8
        %303 = vbcast.lane.b32.xlu0 %v297, %s302
        %v304 = vpop.permute.xlu0 %303
        %v305 = vlaneseq
        %v306 = vshrl.u32 %v305, 7
        %v307 = vsub.s32 2, %v306
        %v308 = vrot.slane %v281, %v307
        %310 = vbcast.lane.b32.xlu0 %v308, 256
        %v311 = vpop.permute.xlu0 %310
        %s313 = sor.u32 256, 8
        %314 = vbcast.lane.b32.xlu0 %v308, %s313
        %v315 = vpop.permute.xlu0 %314
        %v316 = vlaneseq
        %v317 = vshrl.u32 %v316, 7
        %v318 = vsub.s32 3, %v317
        %v319 = vrot.slane %v281, %v318
        %321 = vbcast.lane.b32.xlu0 %v319, 256
        %v322 = vpop.permute.xlu0 %321
        %s324 = sor.u32 256, 8
        %325 = vbcast.lane.b32.xlu0 %v319, %s324
        %v326 = vpop.permute.xlu0 %325
        %v327 = vlaneseq
        %v328 = vshrl.u32 %v327, 7
        %v329 = vsub.s32 4, %v328
        %v330 = vrot.slane %v281, %v329
        %332 = vbcast.lane.b32.xlu0 %v330, 256
        %v333 = vpop.permute.xlu0 %332
        %s335 = sor.u32 256, 8
        %336 = vbcast.lane.b32.xlu0 %v330, %s335
        %v337 = vpop.permute.xlu0 %336
        %v338 = vlaneseq
        %v339 = vshrl.u32 %v338, 7
        %v340 = vsub.s32 5, %v339
        %v341 = vrot.slane %v281, %v340
        %343 = vbcast.lane.b32.xlu0 %v341, 256
        %v344 = vpop.permute.xlu0 %343
        %s346 = sor.u32 256, 8
        %347 = vbcast.lane.b32.xlu0 %v341, %s346
        %v348 = vpop.permute.xlu0 %347
        %v349 = vlaneseq
        %v350 = vshrl.u32 %v349, 7
        %v351 = vsub.s32 6, %v350
        %v352 = vrot.slane %v281, %v351
        %354 = vbcast.lane.b32.xlu0 %v352, 256
        %v355 = vpop.permute.xlu0 %354
        %s357 = sor.u32 256, 8
        %358 = vbcast.lane.b32.xlu0 %v352, %s357
        %v359 = vpop.permute.xlu0 %358
        %v360 = vlaneseq
        %v361 = vshrl.u32 %v360, 7
        %v362 = vsub.s32 7, %v361
        %v363 = vrot.slane %v281, %v362
        %365 = vbcast.lane.b32.xlu0 %v363, 256
        %v366 = vpop.permute.xlu0 %365
        %s368 = sor.u32 256, 8
        %369 = vbcast.lane.b32.xlu0 %v363, %s368
        %v370 = vpop.permute.xlu0 %369
        %v371 = vlaneseq
        %v372 = vshrl.u32 %v371, 7
        %v373 = vsub.s32 0, %v372
        %v374 = vrot.slane %v282, %v373
        %376 = vbcast.lane.b32.xlu0 %v374, 256
        %v377 = vpop.permute.xlu0 %376
        %s379 = sor.u32 256, 8
        %380 = vbcast.lane.b32.xlu0 %v374, %s379
        %v381 = vpop.permute.xlu0 %380
        %v382 = vlaneseq
        %v383 = vshrl.u32 %v382, 7
        %v384 = vsub.s32 1, %v383
        %v385 = vrot.slane %v282, %v384
        %387 = vbcast.lane.b32.xlu0 %v385, 256
        %v388 = vpop.permute.xlu0 %387
        %s390 = sor.u32 256, 8
        %391 = vbcast.lane.b32.xlu0 %v385, %s390
        %v392 = vpop.permute.xlu0 %391
        %v393 = vlaneseq
        %v394 = vshrl.u32 %v393, 7
        %v395 = vsub.s32 2, %v394
        %v396 = vrot.slane %v282, %v395
        %398 = vbcast.lane.b32.xlu0 %v396, 256
        %v399 = vpop.permute.xlu0 %398
        %s401 = sor.u32 256, 8
        %402 = vbcast.lane.b32.xlu0 %v396, %s401
        %v403 = vpop.permute.xlu0 %402
        %v404 = vlaneseq
        %v405 = vshrl.u32 %v404, 7
        %v406 = vsub.s32 3, %v405
        %v407 = vrot.slane %v282, %v406
        %409 = vbcast.lane.b32.xlu0 %v407, 256
        %v410 = vpop.permute.xlu0 %409
        %s412 = sor.u32 256, 8
        %413 = vbcast.lane.b32.xlu0 %v407, %s412
        %v414 = vpop.permute.xlu0 %413
        %v415 = vlaneseq
        %v416 = vshrl.u32 %v415, 7
        %v417 = vsub.s32 4, %v416
        %v418 = vrot.slane %v282, %v417
        %420 = vbcast.lane.b32.xlu0 %v418, 256
        %v421 = vpop.permute.xlu0 %420
        %s423 = sor.u32 256, 8
        %424 = vbcast.lane.b32.xlu0 %v418, %s423
        %v425 = vpop.permute.xlu0 %424
        %v426 = vlaneseq
        %v427 = vshrl.u32 %v426, 7
        %v428 = vsub.s32 5, %v427
        %v429 = vrot.slane %v282, %v428
        %431 = vbcast.lane.b32.xlu0 %v429, 256
        %v432 = vpop.permute.xlu0 %431
        %s434 = sor.u32 256, 8
        %435 = vbcast.lane.b32.xlu0 %v429, %s434
        %v436 = vpop.permute.xlu0 %435
        %v437 = vlaneseq
        %v438 = vshrl.u32 %v437, 7
        %v439 = vsub.s32 6, %v438
        %v440 = vrot.slane %v282, %v439
        %442 = vbcast.lane.b32.xlu0 %v440, 256
        %v443 = vpop.permute.xlu0 %442
        %s445 = sor.u32 256, 8
        %446 = vbcast.lane.b32.xlu0 %v440, %s445
        %v447 = vpop.permute.xlu0 %446
        %v448 = vlaneseq
        %v449 = vshrl.u32 %v448, 7
        %v450 = vsub.s32 7, %v449
        %v451 = vrot.slane %v282, %v450
        %453 = vbcast.lane.b32.xlu0 %v451, 256
        %v454 = vpop.permute.xlu0 %453
        %s456 = sor.u32 256, 8
        %457 = vbcast.lane.b32.xlu0 %v451, %s456
        %v458 = vpop.permute.xlu0 %457
        %v459 = vlaneseq
        %v460 = vand.u32 %v459, 127
        %vm461 = vcmp.eq.s32.totalorder %v289, %v460
        %vm462 = vcmp.eq.s32.totalorder %v293, %v460
        %vm463 = vcmp.eq.s32.totalorder %v300, %v460
        %vm464 = vcmp.eq.s32.totalorder %v304, %v460
        %vm465 = vcmp.eq.s32.totalorder %v311, %v460
        %vm466 = vcmp.eq.s32.totalorder %v315, %v460
        %vm467 = vcmp.eq.s32.totalorder %v322, %v460
        %vm468 = vcmp.eq.s32.totalorder %v326, %v460
        %vm469 = vcmp.eq.s32.totalorder %v333, %v460
        %vm470 = vcmp.eq.s32.totalorder %v337, %v460
        %vm471 = vcmp.eq.s32.totalorder %v344, %v460
        %vm472 = vcmp.eq.s32.totalorder %v348, %v460
        %vm473 = vcmp.eq.s32.totalorder %v355, %v460
        %vm474 = vcmp.eq.s32.totalorder %v359, %v460
        %vm475 = vcmp.eq.s32.totalorder %v366, %v460
        %vm476 = vcmp.eq.s32.totalorder %v370, %v460
        %vm477 = vcmp.eq.s32.totalorder %v377, %v460
        %vm478 = vcmp.eq.s32.totalorder %v381, %v460
        %vm479 = vcmp.eq.s32.totalorder %v388, %v460
        %vm480 = vcmp.eq.s32.totalorder %v392, %v460
        %vm481 = vcmp.eq.s32.totalorder %v399, %v460
        %vm482 = vcmp.eq.s32.totalorder %v403, %v460
        %vm483 = vcmp.eq.s32.totalorder %v410, %v460
        %vm484 = vcmp.eq.s32.totalorder %v414, %v460
        %vm485 = vcmp.eq.s32.totalorder %v421, %v460
        %vm486 = vcmp.eq.s32.totalorder %v425, %v460
        %vm487 = vcmp.eq.s32.totalorder %v432, %v460
        %vm488 = vcmp.eq.s32.totalorder %v436, %v460
        %vm489 = vcmp.eq.s32.totalorder %v443, %v460
        %vm490 = vcmp.eq.s32.totalorder %v447, %v460
        %vm491 = vcmp.eq.s32.totalorder %v454, %v460
        %vm492 = vcmp.eq.s32.totalorder %v458, %v460
        %v493 = vsel %vm461, 1, 0
        %v494 = vsel %vm462, 1, 0
        %v495 = vsel %vm463, 1, 0
        %v496 = vsel %vm464, 1, 0
        %v497 = vsel %vm465, 1, 0
        %v498 = vsel %vm466, 1, 0
        %v499 = vsel %vm467, 1, 0
        %v500 = vsel %vm468, 1, 0
        %v501 = vsel %vm469, 1, 0
        %v502 = vsel %vm470, 1, 0
        %v503 = vsel %vm471, 1, 0
        %v504 = vsel %vm472, 1, 0
        %v505 = vsel %vm473, 1, 0
        %v506 = vsel %vm474, 1, 0
        %v507 = vsel %vm475, 1, 0
        %v508 = vsel %vm476, 1, 0
        %v509 = vsel %vm477, 1, 0
        %v510 = vsel %vm478, 1, 0
        %v511 = vsel %vm479, 1, 0
        %v512 = vsel %vm480, 1, 0
        %v513 = vsel %vm481, 1, 0
        %v514 = vsel %vm482, 1, 0
        %v515 = vsel %vm483, 1, 0
        %v516 = vsel %vm484, 1, 0
        %v517 = vsel %vm485, 1, 0
        %v518 = vsel %vm486, 1, 0
        %v519 = vsel %vm487, 1, 0
        %v520 = vsel %vm488, 1, 0
        %v521 = vsel %vm489, 1, 0
        %v522 = vsel %vm490, 1, 0
        %v523 = vsel %vm491, 1, 0
        %v524 = vsel %vm492, 1, 0
        %v525 = vcvt.s32.f32 %v493
        %v526 = vcvt.s32.f32 %v494
        %v527 = vcvt.s32.f32 %v495
        %v528 = vcvt.s32.f32 %v496
        %v529 = vcvt.s32.f32 %v497
        %v530 = vcvt.s32.f32 %v498
        %v531 = vcvt.s32.f32 %v499
        %v532 = vcvt.s32.f32 %v500
        %v533 = vcvt.s32.f32 %v501
        %v534 = vcvt.s32.f32 %v502
        %v535 = vcvt.s32.f32 %v503
        %v536 = vcvt.s32.f32 %v504
        %v537 = vcvt.s32.f32 %v505
        %v538 = vcvt.s32.f32 %v506
        %v539 = vcvt.s32.f32 %v507
        %v540 = vcvt.s32.f32 %v508
        %v541 = vcvt.s32.f32 %v509
        %v542 = vcvt.s32.f32 %v510
        %v543 = vcvt.s32.f32 %v511
        %v544 = vcvt.s32.f32 %v512
        %v545 = vcvt.s32.f32 %v513
        %v546 = vcvt.s32.f32 %v514
        %v547 = vcvt.s32.f32 %v515
        %v548 = vcvt.s32.f32 %v516
        %v549 = vcvt.s32.f32 %v517
        %v550 = vcvt.s32.f32 %v518
        %v551 = vcvt.s32.f32 %v519
        %v552 = vcvt.s32.f32 %v520
        %v553 = vcvt.s32.f32 %v521
        %v554 = vcvt.s32.f32 %v522
        %v555 = vcvt.s32.f32 %v523
        %v556 = vcvt.s32.f32 %v524
        %v557 = vpack.c.bf16 %v526, %v525
        %v558 = vpack.c.bf16 %v528, %v527
        %v559 = vpack.c.bf16 %v530, %v529
        %v560 = vpack.c.bf16 %v532, %v531
        %v561 = vpack.c.bf16 %v534, %v533
        %v562 = vpack.c.bf16 %v536, %v535
        %v563 = vpack.c.bf16 %v538, %v537
        %v564 = vpack.c.bf16 %v540, %v539
        %v565 = vpack.c.bf16 %v542, %v541
        %v566 = vpack.c.bf16 %v544, %v543
        %v567 = vpack.c.bf16 %v546, %v545
        %v568 = vpack.c.bf16 %v548, %v547
        %v569 = vpack.c.bf16 %v550, %v549
        %v570 = vpack.c.bf16 %v552, %v551
        %v571 = vpack.c.bf16 %v554, %v553
        %v572 = vpack.c.bf16 %v556, %v555
        %v573 = vld [vmem:[%s1] sm:$0xf]
        %v574 = vld [vmem:[%s1 + $0x4] sm:$0xf]
        %v575 = vld [vmem:[%s1 + $0x8] sm:$0xf]
        %v576 = vld [vmem:[%s1 + $0xc] sm:$0xf]
        %v577 = vld [vmem:[%s1 + $0x10] sm:$0xf]
        %v578 = vld [vmem:[%s1 + $0x14] sm:$0xf]
        %v579 = vld [vmem:[%s1 + $0x18] sm:$0xf]
        %v580 = vld [vmem:[%s1 + $0x1c] sm:$0xf]
        %v581 = vld [vmem:[%s1 + $0x20] sm:$0xf]
        %v582 = vld [vmem:[%s1 + $0x24] sm:$0xf]
        %v583 = vld [vmem:[%s1 + $0x28] sm:$0xf]
        %v584 = vld [vmem:[%s1 + $0x2c] sm:$0xf]
        %v585 = vld [vmem:[%s1 + $0x30] sm:$0xf]
        %v586 = vld [vmem:[%s1 + $0x34] sm:$0xf]
        %v587 = vld [vmem:[%s1 + $0x38] sm:$0xf]
        %v588 = vld [vmem:[%s1 + $0x3c] sm:$0xf]
        %v605 = vunpack.c.l.b16 %v573
        %v606 = vunpack.c.l.b16 %v574
        %v607 = vunpack.c.l.b16 %v575
        %v608 = vunpack.c.l.b16 %v576
        %v609 = vunpack.c.l.b16 %v577
        %v610 = vunpack.c.l.b16 %v578
        %v611 = vunpack.c.l.b16 %v579
        %v612 = vunpack.c.l.b16 %v580
        %v613 = vunpack.c.l.b16 %v581
        %v614 = vunpack.c.l.b16 %v582
        %v615 = vunpack.c.l.b16 %v583
        %v616 = vunpack.c.l.b16 %v584
        %v617 = vunpack.c.l.b16 %v585
        %v618 = vunpack.c.l.b16 %v586
        %v619 = vunpack.c.l.b16 %v587
        %v620 = vunpack.c.l.b16 %v588
        %v621 = vpack.c.b16 %v606, %v605
        %v622 = vpack.c.b16 %v608, %v607
        %v623 = vpack.c.b16 %v610, %v609
        %v624 = vpack.c.b16 %v612, %v611
        %v625 = vpack.c.b16 %v614, %v613
        %v626 = vpack.c.b16 %v616, %v615
        %v627 = vpack.c.b16 %v618, %v617
        %v628 = vpack.c.b16 %v620, %v619
        %637 = vmatprep.subr.bf16.mxu0 0
        %638 = vmatpush1.bf16.msra.mxu0 %v621
        %639 = vmatprep.subr.bf16.mxu0 0
        %640 = vmatpush1.bf16.msra.mxu0 %v622
        %641 = vmatprep.subr.bf16.mxu0 0
        %642 = vmatpush1.bf16.msra.mxu0 %v623
        %643 = vmatprep.subr.bf16.mxu0 0
        %644 = vmatpush1.bf16.msra.mxu0 %v624
        %645 = vmatprep.subr.bf16.mxu0 0
        %646 = vmatpush1.bf16.msra.mxu0 %v625
        %647 = vmatprep.subr.bf16.mxu0 0
        %648 = vmatpush1.bf16.msra.mxu0 %v626
        %649 = vmatprep.subr.bf16.mxu0 0
        %650 = vmatpush1.bf16.msra.mxu0 %v627
        %651 = vmatprep.subr.bf16.mxu0 0
        %652 = vmatpush1.bf16.msra.mxu0 %v628
        %653 = vmatprep.subr.bf16.mxu0 0
        %654 = vmatpush1.bf16.msra.mxu0 0
        %655 = vmatprep.subr.bf16.mxu0 0
        %656 = vmatpush1.bf16.msra.mxu0 0
        %657 = vmatprep.subr.bf16.mxu0 0
        %658 = vmatpush1.bf16.msra.mxu0 0
        %659 = vmatprep.subr.bf16.mxu0 0
        %660 = vmatpush1.bf16.msra.mxu0 0
        %661 = vmatprep.subr.bf16.mxu0 0
        %662 = vmatpush1.bf16.msra.mxu0 0
        %663 = vmatprep.subr.bf16.mxu0 0
        %664 = vmatpush1.bf16.msra.mxu0 0
        %665 = vmatprep.subr.bf16.mxu0 0
        %666 = vmatpush1.bf16.msra.mxu0 0
        %667 = vmatprep.subr.bf16.mxu0 0
        %668 = vmatpush1.bf16.msra.mxu0 0
        %669 = vmatprep.mubr.bf16.mxu0 0
        %670 = vmatmul.mubr.bf16.gmra.mrb[0].mxu0 %v557
        %v671 = vpop.f32.mrb[0].mxu0
        %v672 = vadd.f32 0.0, %v671
        %v673 = vpop.f32.mrb[0].mxu0
        %v674 = vpop.f32.mrb[0].mxu0
        %v675 = vadd.f32 0.0, %v674
        %v676 = vpop.f32.mrb[0].mxu0
        %677 = vmatprep.mubr.bf16.mxu0 0
        %678 = vmatmul.mubr.bf16.gmra.mrb[0].mxu0 %v558
        %v679 = vpop.f32.mrb[0].mxu0
        %v680 = vadd.f32 0.0, %v679
        %v681 = vpop.f32.mrb[0].mxu0
        %v682 = vpop.f32.mrb[0].mxu0
        %v683 = vadd.f32 0.0, %v682
        %v684 = vpop.f32.mrb[0].mxu0
        %685 = vmatprep.mubr.bf16.mxu0 0
        %686 = vmatmul.mubr.bf16.gmra.mrb[0].mxu0 %v559
        %v687 = vpop.f32.mrb[0].mxu0
        %v688 = vadd.f32 0.0, %v687
        %v689 = vpop.f32.mrb[0].mxu0
        %v690 = vpop.f32.mrb[0].mxu0
        %v691 = vadd.f32 0.0, %v690
        %v692 = vpop.f32.mrb[0].mxu0
        %693 = vmatprep.mubr.bf16.mxu0 0
        %694 = vmatmul.mubr.bf16.gmra.mrb[0].mxu0 %v560
        %v695 = vpop.f32.mrb[0].mxu0
        %v696 = vadd.f32 0.0, %v695
        %v697 = vpop.f32.mrb[0].mxu0
        %v698 = vpop.f32.mrb[0].mxu0
        %v699 = vadd.f32 0.0, %v698
        %v700 = vpop.f32.mrb[0].mxu0
        %701 = vmatprep.mubr.bf16.mxu0 0
        %702 = vmatmul.mubr.bf16.gmra.mrb[0].mxu0 %v561
        %v703 = vpop.f32.mrb[0].mxu0
        %v704 = vadd.f32 0.0, %v703
        %v705 = vpop.f32.mrb[0].mxu0
        %v706 = vpop.f32.mrb[0].mxu0
        %v707 = vadd.f32 0.0, %v706
        %v708 = vpop.f32.mrb[0].mxu0
        %709 = vmatprep.mubr.bf16.mxu0 0
        %710 = vmatmul.mubr.bf16.gmra.mrb[0].mxu0 %v562
        %v711 = vpop.f32.mrb[0].mxu0
        %v712 = vadd.f32 0.0, %v711
        %v713 = vpop.f32.mrb[0].mxu0
        %v714 = vpop.f32.mrb[0].mxu0
        %v715 = vadd.f32 0.0, %v714
        %v716 = vpop.f32.mrb[0].mxu0
        %717 = vmatprep.mubr.bf16.mxu0 0
        %718 = vmatmul.mubr.bf16.gmra.mrb[0].mxu0 %v563
        %v719 = vpop.f32.mrb[0].mxu0
        %v720 = vadd.f32 0.0, %v719
        %v721 = vpop.f32.mrb[0].mxu0
        %v722 = vpop.f32.mrb[0].mxu0
        %v723 = vadd.f32 0.0, %v722
        %v724 = vpop.f32.mrb[0].mxu0
        %725 = vmatprep.mubr.bf16.mxu0 0
        %726 = vmatmul.mubr.bf16.gmra.mrb[0].mxu0 %v564
        %v727 = vpop.f32.mrb[0].mxu0
        %v728 = vadd.f32 0.0, %v727
        %v729 = vpop.f32.mrb[0].mxu0
        %v730 = vpop.f32.mrb[0].mxu0
        %v731 = vadd.f32 0.0, %v730
        %v732 = vpop.f32.mrb[0].mxu0
        %733 = vmatprep.mubr.bf16.mxu0 0
        %734 = vmatmul.mubr.bf16.gmra.mrb[0].mxu0 %v565
        %v735 = vpop.f32.mrb[0].mxu0
        %v736 = vadd.f32 0.0, %v735
        %v737 = vpop.f32.mrb[0].mxu0
        %v738 = vpop.f32.mrb[0].mxu0
        %v739 = vadd.f32 0.0, %v738
        %v740 = vpop.f32.mrb[0].mxu0
        %741 = vmatprep.mubr.bf16.mxu0 0
        %742 = vmatmul.mubr.bf16.gmra.mrb[0].mxu0 %v566
        %v743 = vpop.f32.mrb[0].mxu0
        %v744 = vadd.f32 0.0, %v743
        %v745 = vpop.f32.mrb[0].mxu0
        %v746 = vpop.f32.mrb[0].mxu0
        %v747 = vadd.f32 0.0, %v746
        %v748 = vpop.f32.mrb[0].mxu0
        %749 = vmatprep.mubr.bf16.mxu0 0
        %750 = vmatmul.mubr.bf16.gmra.mrb[0].mxu0 %v567
        %v751 = vpop.f32.mrb[0].mxu0
        %v752 = vadd.f32 0.0, %v751
        %v753 = vpop.f32.mrb[0].mxu0
        %v754 = vpop.f32.mrb[0].mxu0
        %v755 = vadd.f32 0.0, %v754
        %v756 = vpop.f32.mrb[0].mxu0
        %757 = vmatprep.mubr.bf16.mxu0 0
        %758 = vmatmul.mubr.bf16.gmra.mrb[0].mxu0 %v568
        %v759 = vpop.f32.mrb[0].mxu0
        %v760 = vadd.f32 0.0, %v759
        %v761 = vpop.f32.mrb[0].mxu0
        %v762 = vpop.f32.mrb[0].mxu0
        %v763 = vadd.f32 0.0, %v762
        %v764 = vpop.f32.mrb[0].mxu0
        %765 = vmatprep.mubr.bf16.mxu0 0
        %766 = vmatmul.mubr.bf16.gmra.mrb[0].mxu0 %v569
        %v767 = vpop.f32.mrb[0].mxu0
        %v768 = vadd.f32 0.0, %v767
        %v769 = vpop.f32.mrb[0].mxu0
        %v770 = vpop.f32.mrb[0].mxu0
        %v771 = vadd.f32 0.0, %v770
        %v772 = vpop.f32.mrb[0].mxu0
        %773 = vmatprep.mubr.bf16.mxu0 0
        %774 = vmatmul.mubr.bf16.gmra.mrb[0].mxu0 %v570
        %v775 = vpop.f32.mrb[0].mxu0
        %v776 = vadd.f32 0.0, %v775
        %v777 = vpop.f32.mrb[0].mxu0
        %v778 = vpop.f32.mrb[0].mxu0
        %v779 = vadd.f32 0.0, %v778
        %v780 = vpop.f32.mrb[0].mxu0
        %781 = vmatprep.mubr.bf16.mxu0 0
        %782 = vmatmul.mubr.bf16.gmra.mrb[0].mxu0 %v571
        %v783 = vpop.f32.mrb[0].mxu0
        %v784 = vadd.f32 0.0, %v783
        %v785 = vpop.f32.mrb[0].mxu0
        %v786 = vpop.f32.mrb[0].mxu0
        %v787 = vadd.f32 0.0, %v786
        %v788 = vpop.f32.mrb[0].mxu0
        %789 = vmatprep.mubr.bf16.mxu0 0
        %790 = vmatmul.mubr.bf16.gmra.mrb[0].mxu0 %v572
        %v791 = vpop.f32.mrb[0].mxu0
        %v792 = vadd.f32 0.0, %v791
        %v793 = vpop.f32.mrb[0].mxu0
        %v794 = vpop.f32.mrb[0].mxu0
        %v795 = vadd.f32 0.0, %v794
        %v796 = vpop.f32.mrb[0].mxu0
        %797 = vdwg.mxu0
        %v798 = vpack.c.bf16 %v675, %v672
        %v799 = vpack.c.bf16 %v683, %v680
        %v800 = vpack.c.bf16 %v691, %v688
        %v801 = vpack.c.bf16 %v699, %v696
        %v802 = vpack.c.bf16 %v707, %v704
        %v803 = vpack.c.bf16 %v715, %v712
        %v804 = vpack.c.bf16 %v723, %v720
        %v805 = vpack.c.bf16 %v731, %v728
        %v806 = vpack.c.bf16 %v739, %v736
        %v807 = vpack.c.bf16 %v747, %v744
        %v808 = vpack.c.bf16 %v755, %v752
        %v809 = vpack.c.bf16 %v763, %v760
        %v810 = vpack.c.bf16 %v771, %v768
        %v811 = vpack.c.bf16 %v779, %v776
        %v812 = vpack.c.bf16 %v787, %v784
        %v813 = vpack.c.bf16 %v795, %v792
        %v815 = vshrl.u32 %v798, 16
        %v817 = vshll.u32 %v798, 16
        %v819 = vrot.slane %v817, 1
        %v820 = vor.u32 %v815, %v819
        %v822 = vshrl.u32 %v799, 16
        %v824 = vshll.u32 %v799, 16
        %v826 = vrot.slane %v824, 1
        %v827 = vor.u32 %v822, %v826
        %v829 = vshrl.u32 %v800, 16
        %v831 = vshll.u32 %v800, 16
        %v833 = vrot.slane %v831, 1
        %v834 = vor.u32 %v829, %v833
        %v836 = vshrl.u32 %v801, 16
        %v838 = vshll.u32 %v801, 16
        %v840 = vrot.slane %v838, 1
        %v841 = vor.u32 %v836, %v840
        %v843 = vshrl.u32 %v802, 16
        %v845 = vshll.u32 %v802, 16
        %v847 = vrot.slane %v845, 1
        %v848 = vor.u32 %v843, %v847
        %v850 = vshrl.u32 %v803, 16
        %v852 = vshll.u32 %v803, 16
        %v854 = vrot.slane %v852, 1
        %v855 = vor.u32 %v850, %v854
        %v857 = vshrl.u32 %v804, 16
        %v859 = vshll.u32 %v804, 16
        %v861 = vrot.slane %v859, 1
        %v862 = vor.u32 %v857, %v861
        %v864 = vshrl.u32 %v805, 16
        %v866 = vshll.u32 %v805, 16
        %v868 = vrot.slane %v866, 1
        %v869 = vor.u32 %v864, %v868
        %v871 = vshrl.u32 %v806, 16
        %v873 = vshll.u32 %v806, 16
        %v875 = vrot.slane %v873, 1
        %v876 = vor.u32 %v871, %v875
        %v878 = vshrl.u32 %v807, 16
        %v880 = vshll.u32 %v807, 16
        %v882 = vrot.slane %v880, 1
        %v883 = vor.u32 %v878, %v882
        %v885 = vshrl.u32 %v808, 16
        %v887 = vshll.u32 %v808, 16
        %v889 = vrot.slane %v887, 1
        %v890 = vor.u32 %v885, %v889
        %v892 = vshrl.u32 %v809, 16
        %v894 = vshll.u32 %v809, 16
        %v896 = vrot.slane %v894, 1
        %v897 = vor.u32 %v892, %v896
        %v899 = vshrl.u32 %v810, 16
        %v901 = vshll.u32 %v810, 16
        %v903 = vrot.slane %v901, 1
        %v904 = vor.u32 %v899, %v903
        %v906 = vshrl.u32 %v811, 16
        %v908 = vshll.u32 %v811, 16
        %v910 = vrot.slane %v908, 1
        %v911 = vor.u32 %v906, %v910
        %v913 = vshrl.u32 %v812, 16
        %v915 = vshll.u32 %v812, 16
        %v917 = vrot.slane %v915, 1
        %v918 = vor.u32 %v913, %v917
        %v920 = vshrl.u32 %v813, 16
        %v922 = vshll.u32 %v813, 16
        %v924 = vrot.slane %v922, 1
        %v925 = vor.u32 %v920, %v924
        %926 = vrot.lane.b32.xlu0 %v820, 32
        %v927 = vpop.permute.xlu0 %926
        %928 = vrot.lane.b32.xlu0 %v827, 32
        %v929 = vpop.permute.xlu0 %928
        %930 = vrot.lane.b32.xlu0 %v834, 32
        %v931 = vpop.permute.xlu0 %930
        %932 = vrot.lane.b32.xlu0 %v841, 32
        %v933 = vpop.permute.xlu0 %932
        %934 = vrot.lane.b32.xlu0 %v848, 32
        %v935 = vpop.permute.xlu0 %934
        %936 = vrot.lane.b32.xlu0 %v855, 32
        %v937 = vpop.permute.xlu0 %936
        %938 = vrot.lane.b32.xlu0 %v862, 32
        %v939 = vpop.permute.xlu0 %938
        %940 = vrot.lane.b32.xlu0 %v869, 32
        %v941 = vpop.permute.xlu0 %940
        %942 = vrot.lane.b32.xlu0 %v876, 32
        %v943 = vpop.permute.xlu0 %942
        %944 = vrot.lane.b32.xlu0 %v883, 32
        %v945 = vpop.permute.xlu0 %944
        %946 = vrot.lane.b32.xlu0 %v890, 32
        %v947 = vpop.permute.xlu0 %946
        %948 = vrot.lane.b32.xlu0 %v897, 32
        %v949 = vpop.permute.xlu0 %948
        %950 = vrot.lane.b32.xlu0 %v904, 32
        %v951 = vpop.permute.xlu0 %950
        %952 = vrot.lane.b32.xlu0 %v911, 32
        %v953 = vpop.permute.xlu0 %952
        %954 = vrot.lane.b32.xlu0 %v918, 32
        %v955 = vpop.permute.xlu0 %954
        %956 = vrot.lane.b32.xlu0 %v925, 32
        %v957 = vpop.permute.xlu0 %956
        %v974 = vrot.slane %v798, 1
        %v975 = vrot.slane %v799, 1
        %v976 = vrot.slane %v800, 1
        %v977 = vrot.slane %v801, 1
        %v978 = vrot.slane %v802, 1
        %v979 = vrot.slane %v803, 1
        %v980 = vrot.slane %v804, 1
        %v981 = vrot.slane %v805, 1
        %v982 = vrot.slane %v806, 1
        %v983 = vrot.slane %v807, 1
        %v984 = vrot.slane %v808, 1
        %v985 = vrot.slane %v809, 1
        %v986 = vrot.slane %v810, 1
        %v987 = vrot.slane %v811, 1
        %v988 = vrot.slane %v812, 1
        %v989 = vrot.slane %v813, 1
        %990 = vrot.lane.b32.xlu0 %v974, 64
        %v991 = vpop.permute.xlu0 %990
        %992 = vrot.lane.b32.xlu0 %v975, 64
        %v993 = vpop.permute.xlu0 %992
        %994 = vrot.lane.b32.xlu0 %v976, 64
        %v995 = vpop.permute.xlu0 %994
        %996 = vrot.lane.b32.xlu0 %v977, 64
        %v997 = vpop.permute.xlu0 %996
        %998 = vrot.lane.b32.xlu0 %v978, 64
        %v999 = vpop.permute.xlu0 %998
        %1000 = vrot.lane.b32.xlu0 %v979, 64
        %v1001 = vpop.permute.xlu0 %1000
        %1002 = vrot.lane.b32.xlu0 %v980, 64
        %v1003 = vpop.permute.xlu0 %1002
        %1004 = vrot.lane.b32.xlu0 %v981, 64
        %v1005 = vpop.permute.xlu0 %1004
        %1006 = vrot.lane.b32.xlu0 %v982, 64
        %v1007 = vpop.permute.xlu0 %1006
        %1008 = vrot.lane.b32.xlu0 %v983, 64
        %v1009 = vpop.permute.xlu0 %1008
        %1010 = vrot.lane.b32.xlu0 %v984, 64
        %v1011 = vpop.permute.xlu0 %1010
        %1012 = vrot.lane.b32.xlu0 %v985, 64
        %v1013 = vpop.permute.xlu0 %1012
        %1014 = vrot.lane.b32.xlu0 %v986, 64
        %v1015 = vpop.permute.xlu0 %1014
        %1016 = vrot.lane.b32.xlu0 %v987, 64
        %v1017 = vpop.permute.xlu0 %1016
        %1018 = vrot.lane.b32.xlu0 %v988, 64
        %v1019 = vpop.permute.xlu0 %1018
        %1020 = vrot.lane.b32.xlu0 %v989, 64
        %v1021 = vpop.permute.xlu0 %1020
        %v1022 = vrot.slane %v815, 1
        %v1023 = vrot.slane %v817, 2
        %v1024 = vor.u32 %v1022, %v1023
        %v1025 = vrot.slane %v822, 1
        %v1026 = vrot.slane %v824, 2
        %v1027 = vor.u32 %v1025, %v1026
        %v1028 = vrot.slane %v829, 1
        %v1029 = vrot.slane %v831, 2
        %v1030 = vor.u32 %v1028, %v1029
        %v1031 = vrot.slane %v836, 1
        %v1032 = vrot.slane %v838, 2
        %v1033 = vor.u32 %v1031, %v1032
        %v1034 = vrot.slane %v843, 1
        %v1035 = vrot.slane %v845, 2
        %v1036 = vor.u32 %v1034, %v1035
        %v1037 = vrot.slane %v850, 1
        %v1038 = vrot.slane %v852, 2
        %v1039 = vor.u32 %v1037, %v1038
        %v1040 = vrot.slane %v857, 1
        %v1041 = vrot.slane %v859, 2
        %v1042 = vor.u32 %v1040, %v1041
        %v1043 = vrot.slane %v864, 1
        %v1044 = vrot.slane %v866, 2
        %v1045 = vor.u32 %v1043, %v1044
        %v1046 = vrot.slane %v871, 1
        %v1047 = vrot.slane %v873, 2
        %v1048 = vor.u32 %v1046, %v1047
        %v1049 = vrot.slane %v878, 1
        %v1050 = vrot.slane %v880, 2
        %v1051 = vor.u32 %v1049, %v1050
        %v1052 = vrot.slane %v885, 1
        %v1053 = vrot.slane %v887, 2
        %v1054 = vor.u32 %v1052, %v1053
        %v1055 = vrot.slane %v892, 1
        %v1056 = vrot.slane %v894, 2
        %v1057 = vor.u32 %v1055, %v1056
        %v1058 = vrot.slane %v899, 1
        %v1059 = vrot.slane %v901, 2
        %v1060 = vor.u32 %v1058, %v1059
        %v1061 = vrot.slane %v906, 1
        %v1062 = vrot.slane %v908, 2
        %v1063 = vor.u32 %v1061, %v1062
        %v1064 = vrot.slane %v913, 1
        %v1065 = vrot.slane %v915, 2
        %v1066 = vor.u32 %v1064, %v1065
        %v1067 = vrot.slane %v920, 1
        %v1068 = vrot.slane %v922, 2
        %v1069 = vor.u32 %v1067, %v1068
        %1070 = vrot.lane.b32.xlu0 %v1024, 96
        %v1071 = vpop.permute.xlu0 %1070
        %1072 = vrot.lane.b32.xlu0 %v1027, 96
        %v1073 = vpop.permute.xlu0 %1072
        %1074 = vrot.lane.b32.xlu0 %v1030, 96
        %v1075 = vpop.permute.xlu0 %1074
        %1076 = vrot.lane.b32.xlu0 %v1033, 96
        %v1077 = vpop.permute.xlu0 %1076
        %1078 = vrot.lane.b32.xlu0 %v1036, 96
        %v1079 = vpop.permute.xlu0 %1078
        %1080 = vrot.lane.b32.xlu0 %v1039, 96
        %v1081 = vpop.permute.xlu0 %1080
        %1082 = vrot.lane.b32.xlu0 %v1042, 96
        %v1083 = vpop.permute.xlu0 %1082
        %1084 = vrot.lane.b32.xlu0 %v1045, 96
        %v1085 = vpop.permute.xlu0 %1084
        %1086 = vrot.lane.b32.xlu0 %v1048, 96
        %v1087 = vpop.permute.xlu0 %1086
        %1088 = vrot.lane.b32.xlu0 %v1051, 96
        %v1089 = vpop.permute.xlu0 %1088
        %1090 = vrot.lane.b32.xlu0 %v1054, 96
        %v1091 = vpop.permute.xlu0 %1090
        %1092 = vrot.lane.b32.xlu0 %v1057, 96
        %v1093 = vpop.permute.xlu0 %1092
        %1094 = vrot.lane.b32.xlu0 %v1060, 96
        %v1095 = vpop.permute.xlu0 %1094
        %1096 = vrot.lane.b32.xlu0 %v1063, 96
        %v1097 = vpop.permute.xlu0 %1096
        %1098 = vrot.lane.b32.xlu0 %v1066, 96
        %v1099 = vpop.permute.xlu0 %1098
        %1100 = vrot.lane.b32.xlu0 %v1069, 96
        %v1101 = vpop.permute.xlu0 %1100
        %vm1102 = vcmask 261120
        %v1104 = vsel %vm1102, %v798, %v927
        %v1106 = vsel %vm1102, %v799, %v929
        %v1108 = vsel %vm1102, %v800, %v931
        %v1110 = vsel %vm1102, %v801, %v933
        %v1112 = vsel %vm1102, %v802, %v935
        %v1114 = vsel %vm1102, %v803, %v937
        %v1116 = vsel %vm1102, %v804, %v939
        %v1118 = vsel %vm1102, %v805, %v941
        %v1120 = vsel %vm1102, %v806, %v943
        %v1122 = vsel %vm1102, %v807, %v945
        %v1124 = vsel %vm1102, %v808, %v947
        %v1126 = vsel %vm1102, %v809, %v949
        %v1128 = vsel %vm1102, %v810, %v951
        %v1130 = vsel %vm1102, %v811, %v953
        %v1132 = vsel %vm1102, %v812, %v955
        %v1134 = vsel %vm1102, %v813, %v957
        %vm1135 = vcmask 523264
        %v1137 = vsel %vm1135, %v1104, %v991
        %v1139 = vsel %vm1135, %v1106, %v993
        %v1141 = vsel %vm1135, %v1108, %v995
        %v1143 = vsel %vm1135, %v1110, %v997
        %v1145 = vsel %vm1135, %v1112, %v999
        %v1147 = vsel %vm1135, %v1114, %v1001
        %v1149 = vsel %vm1135, %v1116, %v1003
        %v1151 = vsel %vm1135, %v1118, %v1005
        %v1153 = vsel %vm1135, %v1120, %v1007
        %v1155 = vsel %vm1135, %v1122, %v1009
        %v1157 = vsel %vm1135, %v1124, %v1011
        %v1159 = vsel %vm1135, %v1126, %v1013
        %v1161 = vsel %vm1135, %v1128, %v1015
        %v1163 = vsel %vm1135, %v1130, %v1017
        %v1165 = vsel %vm1135, %v1132, %v1019
        %v1167 = vsel %vm1135, %v1134, %v1021
        %vm1168 = vcmask 785408
        %v1170 = vsel %vm1168, %v1137, %v1071
        %v1172 = vsel %vm1168, %v1139, %v1073
        %v1174 = vsel %vm1168, %v1141, %v1075
        %v1176 = vsel %vm1168, %v1143, %v1077
        %v1178 = vsel %vm1168, %v1145, %v1079
        %v1180 = vsel %vm1168, %v1147, %v1081
        %v1182 = vsel %vm1168, %v1149, %v1083
        %v1184 = vsel %vm1168, %v1151, %v1085
        %v1186 = vsel %vm1168, %v1153, %v1087
        %v1188 = vsel %vm1168, %v1155, %v1089
        %v1190 = vsel %vm1168, %v1157, %v1091
        %v1192 = vsel %vm1168, %v1159, %v1093
        %v1194 = vsel %vm1168, %v1161, %v1095
        %v1196 = vsel %vm1168, %v1163, %v1097
        %v1198 = vsel %vm1168, %v1165, %v1099
        %v1200 = vsel %vm1168, %v1167, %v1101
        %v1201 = vld [vmem:[%s2] sm:$0xf]
        %v1202 = vld [vmem:[%s2 + $0x4] sm:$0xf]
        %v1203 = vld [vmem:[%s2 + $0x8] sm:$0xf]
        %v1204 = vld [vmem:[%s2 + $0xc] sm:$0xf]
        %v1205 = vld [vmem:[%s2 + $0x10] sm:$0xf]
        %v1206 = vld [vmem:[%s2 + $0x14] sm:$0xf]
        %v1207 = vld [vmem:[%s2 + $0x18] sm:$0xf]
        %v1208 = vld [vmem:[%s2 + $0x1c] sm:$0xf]
        %v1209 = vld [vmem:[%s2 + $0x20] sm:$0xf]
        %v1210 = vld [vmem:[%s2 + $0x24] sm:$0xf]
        %v1211 = vld [vmem:[%s2 + $0x28] sm:$0xf]
        %v1212 = vld [vmem:[%s2 + $0x2c] sm:$0xf]
        %v1213 = vld [vmem:[%s2 + $0x30] sm:$0xf]
        %v1214 = vld [vmem:[%s2 + $0x34] sm:$0xf]
        %v1215 = vld [vmem:[%s2 + $0x38] sm:$0xf]
        %v1216 = vld [vmem:[%s2 + $0x3c] sm:$0xf]
        %v1217 = vld [vmem:[%s3] sm:$0x1]
        %v1219 = vlaneseq
        %v1220 = vshrl.u32 %v1219, 7
        %v1221 = vsub.s32 0, %v1220
        %v1222 = vrot.slane %v1217, %v1221
        %v1240 = vunpack.c.l.b16 %v1170
        %v1241 = vunpack.c.l.b16 %v1172
        %v1242 = vunpack.c.l.b16 %v1174
        %v1243 = vunpack.c.l.b16 %v1176
        %v1244 = vunpack.c.l.b16 %v1178
        %v1245 = vunpack.c.l.b16 %v1180
        %v1246 = vunpack.c.l.b16 %v1182
        %v1247 = vunpack.c.l.b16 %v1184
        %v1248 = vunpack.c.l.b16 %v1186
        %v1249 = vunpack.c.l.b16 %v1188
        %v1250 = vunpack.c.l.b16 %v1190
        %v1251 = vunpack.c.l.b16 %v1192
        %v1252 = vunpack.c.l.b16 %v1194
        %v1253 = vunpack.c.l.b16 %v1196
        %v1254 = vunpack.c.l.b16 %v1198
        %v1255 = vunpack.c.l.b16 %v1200
        %v1256 = vpack.c.b16 %v1241, %v1240
        %v1257 = vpack.c.b16 %v1243, %v1242
        %v1258 = vpack.c.b16 %v1245, %v1244
        %v1259 = vpack.c.b16 %v1247, %v1246
        %v1260 = vpack.c.b16 %v1249, %v1248
        %v1261 = vpack.c.b16 %v1251, %v1250
        %v1262 = vpack.c.b16 %v1253, %v1252
        %v1263 = vpack.c.b16 %v1255, %v1254
        %v1288 = vunpack.c.l.b16 %v1201
        %v1289 = vunpack.c.l.b16 %v1202
        %v1290 = vunpack.c.l.b16 %v1203
        %v1291 = vunpack.c.l.b16 %v1204
        %v1292 = vunpack.c.l.b16 %v1205
        %v1293 = vunpack.c.l.b16 %v1206
        %v1294 = vunpack.c.l.b16 %v1207
        %v1295 = vunpack.c.l.b16 %v1208
        %v1296 = vunpack.c.l.b16 %v1209
        %v1297 = vunpack.c.l.b16 %v1210
        %v1298 = vunpack.c.l.b16 %v1211
        %v1299 = vunpack.c.l.b16 %v1212
        %v1300 = vunpack.c.l.b16 %v1213
        %v1301 = vunpack.c.l.b16 %v1214
        %v1302 = vunpack.c.l.b16 %v1215
        %v1303 = vunpack.c.l.b16 %v1216
        %v1304 = vpack.c.b16 %v1289, %v1288
        %v1305 = vpack.c.b16 %v1291, %v1290
        %v1306 = vpack.c.b16 %v1293, %v1292
        %v1307 = vpack.c.b16 %v1295, %v1294
        %v1308 = vpack.c.b16 %v1297, %v1296
        %v1309 = vpack.c.b16 %v1299, %v1298
        %v1310 = vpack.c.b16 %v1301, %v1300
        %v1311 = vpack.c.b16 %v1303, %v1302
        %1320 = vmatprep.subr.bf16.mxu0 0
        %1321 = vmatpush1.bf16.msra.mxu0 %v1304
        %1322 = vmatprep.subr.bf16.mxu0 0
        %1323 = vmatpush1.bf16.msra.mxu0 %v1305
        %1324 = vmatprep.subr.bf16.mxu0 0
        %1325 = vmatpush1.bf16.msra.mxu0 %v1306
        %1326 = vmatprep.subr.bf16.mxu0 0
        %1327 = vmatpush1.bf16.msra.mxu0 %v1307
        %1328 = vmatprep.subr.bf16.mxu0 0
        %1329 = vmatpush1.bf16.msra.mxu0 %v1308
        %1330 = vmatprep.subr.bf16.mxu0 0
        %1331 = vmatpush1.bf16.msra.mxu0 %v1309
        %1332 = vmatprep.subr.bf16.mxu0 0
        %1333 = vmatpush1.bf16.msra.mxu0 %v1310
        %1334 = vmatprep.subr.bf16.mxu0 0
        %1335 = vmatpush1.bf16.msra.mxu0 %v1311
        %1336 = vmatprep.subr.bf16.mxu0 0
        %1337 = vmatpush1.bf16.msra.mxu0 0
        %1338 = vmatprep.subr.bf16.mxu0 0
        %1339 = vmatpush1.bf16.msra.mxu0 0
        %1340 = vmatprep.subr.bf16.mxu0 0
        %1341 = vmatpush1.bf16.msra.mxu0 0
        %1342 = vmatprep.subr.bf16.mxu0 0
        %1343 = vmatpush1.bf16.msra.mxu0 0
        %1344 = vmatprep.subr.bf16.mxu0 0
        %1345 = vmatpush1.bf16.msra.mxu0 0
        %1346 = vmatprep.subr.bf16.mxu0 0
        %1347 = vmatpush1.bf16.msra.mxu0 0
        %1348 = vmatprep.subr.bf16.mxu0 0
        %1349 = vmatpush1.bf16.msra.mxu0 0
        %1350 = vmatprep.subr.bf16.mxu0 0
        %1351 = vmatpush1.bf16.msra.mxu0 0
        %1352 = vmatprep.mubr.bf16.mxu0 0
        %1353 = vmatmul.mubr.bf16.gmra.mrb[0].mxu0 %v1256
        %v1354 = vpop.f32.mrb[0].mxu0
        %v1355 = vadd.f32 %v1222, %v1354
        %v1356 = vpop.f32.mrb[0].mxu0
        %v1357 = vpop.f32.mrb[0].mxu0
        %v1358 = vadd.f32 %v1222, %v1357
        %v1359 = vpop.f32.mrb[0].mxu0
        %1360 = vmatprep.mubr.bf16.mxu0 0
        %1361 = vmatmul.mubr.bf16.gmra.mrb[0].mxu0 %v1257
        %v1362 = vpop.f32.mrb[0].mxu0
        %v1363 = vadd.f32 %v1222, %v1362
        %v1364 = vpop.f32.mrb[0].mxu0
        %v1365 = vpop.f32.mrb[0].mxu0
        %v1366 = vadd.f32 %v1222, %v1365
        %v1367 = vpop.f32.mrb[0].mxu0
        %1368 = vmatprep.mubr.bf16.mxu0 0
        %1369 = vmatmul.mubr.bf16.gmra.mrb[0].mxu0 %v1258
        %v1370 = vpop.f32.mrb[0].mxu0
        %v1371 = vadd.f32 %v1222, %v1370
        %v1372 = vpop.f32.mrb[0].mxu0
        %v1373 = vpop.f32.mrb[0].mxu0
        %v1374 = vadd.f32 %v1222, %v1373
        %v1375 = vpop.f32.mrb[0].mxu0
        %1376 = vmatprep.mubr.bf16.mxu0 0
        %1377 = vmatmul.mubr.bf16.gmra.mrb[0].mxu0 %v1259
        %v1378 = vpop.f32.mrb[0].mxu0
        %v1379 = vadd.f32 %v1222, %v1378
        %v1380 = vpop.f32.mrb[0].mxu0
        %v1381 = vpop.f32.mrb[0].mxu0
        %v1382 = vadd.f32 %v1222, %v1381
        %v1383 = vpop.f32.mrb[0].mxu0
        %1384 = vmatprep.mubr.bf16.mxu0 0
        %1385 = vmatmul.mubr.bf16.gmra.mrb[0].mxu0 %v1260
        %v1386 = vpop.f32.mrb[0].mxu0
        %v1387 = vadd.f32 %v1222, %v1386
        %v1388 = vpop.f32.mrb[0].mxu0
        %v1389 = vpop.f32.mrb[0].mxu0
        %v1390 = vadd.f32 %v1222, %v1389
        %v1391 = vpop.f32.mrb[0].mxu0
        %1392 = vmatprep.mubr.bf16.mxu0 0
        %1393 = vmatmul.mubr.bf16.gmra.mrb[0].mxu0 %v1261
        %v1394 = vpop.f32.mrb[0].mxu0
        %v1395 = vadd.f32 %v1222, %v1394
        %v1396 = vpop.f32.mrb[0].mxu0
        %v1397 = vpop.f32.mrb[0].mxu0
        %v1398 = vadd.f32 %v1222, %v1397
        %v1399 = vpop.f32.mrb[0].mxu0
        %1400 = vmatprep.mubr.bf16.mxu0 0
        %1401 = vmatmul.mubr.bf16.gmra.mrb[0].mxu0 %v1262
        %v1402 = vpop.f32.mrb[0].mxu0
        %v1403 = vadd.f32 %v1222, %v1402
        %v1404 = vpop.f32.mrb[0].mxu0
        %v1405 = vpop.f32.mrb[0].mxu0
        %v1406 = vadd.f32 %v1222, %v1405
        %v1407 = vpop.f32.mrb[0].mxu0
        %1408 = vmatprep.mubr.bf16.mxu0 0
        %1409 = vmatmul.mubr.bf16.gmra.mrb[0].mxu0 %v1263
        %v1410 = vpop.f32.mrb[0].mxu0
        %v1411 = vadd.f32 %v1222, %v1410
        %v1412 = vpop.f32.mrb[0].mxu0
        %v1413 = vpop.f32.mrb[0].mxu0
        %v1414 = vadd.f32 %v1222, %v1413
        %v1415 = vpop.f32.mrb[0].mxu0
        %1416 = vdwg.mxu0
        %v1417 = vmax.f32 %v1355, 0.0
        %v1418 = vmax.f32 %v1358, 0.0
        %v1419 = vmax.f32 %v1363, 0.0
        %v1420 = vmax.f32 %v1366, 0.0
        %v1421 = vmax.f32 %v1371, 0.0
        %v1422 = vmax.f32 %v1374, 0.0
        %v1423 = vmax.f32 %v1379, 0.0
        %v1424 = vmax.f32 %v1382, 0.0
        %v1425 = vmax.f32 %v1387, 0.0
        %v1426 = vmax.f32 %v1390, 0.0
        %v1427 = vmax.f32 %v1395, 0.0
        %v1428 = vmax.f32 %v1398, 0.0
        %v1429 = vmax.f32 %v1403, 0.0
        %v1430 = vmax.f32 %v1406, 0.0
        %v1431 = vmax.f32 %v1411, 0.0
        %v1432 = vmax.f32 %v1414, 0.0
        %vm1433 = vcmask 1044480
        %v1434 = vsel %vm1433, %v1417, -inf
        %v1435 = vrot.slane %v1434, 4
        %v1436 = vmax.f32 %v1434, %v1435
        %v1437 = vrot.slane %v1436, 2
        %v1438 = vmax.f32 %v1436, %v1437
        %v1439 = vrot.slane %v1438, 1
        %v1440 = vmax.f32 %v1438, %v1439
        %v1441 = vsel %vm1433, %v1418, -inf
        %v1442 = vrot.slane %v1441, 4
        %v1443 = vmax.f32 %v1441, %v1442
        %v1444 = vrot.slane %v1443, 2
        %v1445 = vmax.f32 %v1443, %v1444
        %v1446 = vrot.slane %v1445, 1
        %v1447 = vmax.f32 %v1445, %v1446
        %v1448 = vsel %vm1433, %v1419, -inf
        %v1449 = vrot.slane %v1448, 4
        %v1450 = vmax.f32 %v1448, %v1449
        %v1451 = vrot.slane %v1450, 2
        %v1452 = vmax.f32 %v1450, %v1451
        %v1453 = vrot.slane %v1452, 1
        %v1454 = vmax.f32 %v1452, %v1453
        %v1455 = vsel %vm1433, %v1420, -inf
        %v1456 = vrot.slane %v1455, 4
        %v1457 = vmax.f32 %v1455, %v1456
        %v1458 = vrot.slane %v1457, 2
        %v1459 = vmax.f32 %v1457, %v1458
        %v1460 = vrot.slane %v1459, 1
        %v1461 = vmax.f32 %v1459, %v1460
        %v1462 = vsel %vm1433, %v1421, -inf
        %v1463 = vrot.slane %v1462, 4
        %v1464 = vmax.f32 %v1462, %v1463
        %v1465 = vrot.slane %v1464, 2
        %v1466 = vmax.f32 %v1464, %v1465
        %v1467 = vrot.slane %v1466, 1
        %v1468 = vmax.f32 %v1466, %v1467
        %v1469 = vsel %vm1433, %v1422, -inf
        %v1470 = vrot.slane %v1469, 4
        %v1471 = vmax.f32 %v1469, %v1470
        %v1472 = vrot.slane %v1471, 2
        %v1473 = vmax.f32 %v1471, %v1472
        %v1474 = vrot.slane %v1473, 1
        %v1475 = vmax.f32 %v1473, %v1474
        %v1476 = vsel %vm1433, %v1423, -inf
        %v1477 = vrot.slane %v1476, 4
        %v1478 = vmax.f32 %v1476, %v1477
        %v1479 = vrot.slane %v1478, 2
        %v1480 = vmax.f32 %v1478, %v1479
        %v1481 = vrot.slane %v1480, 1
        %v1482 = vmax.f32 %v1480, %v1481
        %v1483 = vsel %vm1433, %v1424, -inf
        %v1484 = vrot.slane %v1483, 4
        %v1485 = vmax.f32 %v1483, %v1484
        %v1486 = vrot.slane %v1485, 2
        %v1487 = vmax.f32 %v1485, %v1486
        %v1488 = vrot.slane %v1487, 1
        %v1489 = vmax.f32 %v1487, %v1488
        %v1490 = vsel %vm1433, %v1425, -inf
        %v1491 = vrot.slane %v1490, 4
        %v1492 = vmax.f32 %v1490, %v1491
        %v1493 = vrot.slane %v1492, 2
        %v1494 = vmax.f32 %v1492, %v1493
        %v1495 = vrot.slane %v1494, 1
        %v1496 = vmax.f32 %v1494, %v1495
        %v1497 = vsel %vm1433, %v1426, -inf
        %v1498 = vrot.slane %v1497, 4
        %v1499 = vmax.f32 %v1497, %v1498
        %v1500 = vrot.slane %v1499, 2
        %v1501 = vmax.f32 %v1499, %v1500
        %v1502 = vrot.slane %v1501, 1
        %v1503 = vmax.f32 %v1501, %v1502
        %v1504 = vsel %vm1433, %v1427, -inf
        %v1505 = vrot.slane %v1504, 4
        %v1506 = vmax.f32 %v1504, %v1505
        %v1507 = vrot.slane %v1506, 2
        %v1508 = vmax.f32 %v1506, %v1507
        %v1509 = vrot.slane %v1508, 1
        %v1510 = vmax.f32 %v1508, %v1509
        %v1511 = vsel %vm1433, %v1428, -inf
        %v1512 = vrot.slane %v1511, 4
        %v1513 = vmax.f32 %v1511, %v1512
        %v1514 = vrot.slane %v1513, 2
        %v1515 = vmax.f32 %v1513, %v1514
        %v1516 = vrot.slane %v1515, 1
        %v1517 = vmax.f32 %v1515, %v1516
        %v1518 = vsel %vm1433, %v1429, -inf
        %v1519 = vrot.slane %v1518, 4
        %v1520 = vmax.f32 %v1518, %v1519
        %v1521 = vrot.slane %v1520, 2
        %v1522 = vmax.f32 %v1520, %v1521
        %v1523 = vrot.slane %v1522, 1
        %v1524 = vmax.f32 %v1522, %v1523
        %v1525 = vsel %vm1433, %v1430, -inf
        %v1526 = vrot.slane %v1525, 4
        %v1527 = vmax.f32 %v1525, %v1526
        %v1528 = vrot.slane %v1527, 2
        %v1529 = vmax.f32 %v1527, %v1528
        %v1530 = vrot.slane %v1529, 1
        %v1531 = vmax.f32 %v1529, %v1530
        %v1532 = vsel %vm1433, %v1431, -inf
        %v1533 = vrot.slane %v1532, 4
        %v1534 = vmax.f32 %v1532, %v1533
        %v1535 = vrot.slane %v1534, 2
        %v1536 = vmax.f32 %v1534, %v1535
        %v1537 = vrot.slane %v1536, 1
        %v1538 = vmax.f32 %v1536, %v1537
        %v1539 = vsel %vm1433, %v1432, -inf
        %v1540 = vrot.slane %v1539, 4
        %v1541 = vmax.f32 %v1539, %v1540
        %v1542 = vrot.slane %v1541, 2
        %v1543 = vmax.f32 %v1541, %v1542
        %v1544 = vrot.slane %v1543, 1
        %v1545 = vmax.f32 %v1543, %v1544
        %v1546 = vld [vmem:[%s4] sm:$0x7]
        %v1548 = vrot.slane %v1546, 3
        %v1550 = vadd.f32 %v1417, %v1548
        %v1551 = vadd.f32 %v1418, %v1548
        %v1552 = vadd.f32 %v1419, %v1548
        %v1553 = vadd.f32 %v1420, %v1548
        %v1554 = vadd.f32 %v1421, %v1548
        %v1555 = vadd.f32 %v1422, %v1548
        %v1556 = vadd.f32 %v1423, %v1548
        %v1557 = vadd.f32 %v1424, %v1548
        %v1558 = vadd.f32 %v1425, %v1548
        %v1559 = vadd.f32 %v1426, %v1548
        %v1560 = vadd.f32 %v1427, %v1548
        %v1561 = vadd.f32 %v1428, %v1548
        %v1562 = vadd.f32 %v1429, %v1548
        %v1563 = vadd.f32 %v1430, %v1548
        %v1564 = vadd.f32 %v1431, %v1548
        %v1565 = vadd.f32 %v1432, %v1548
        %vm1566 = vcmask 1047557
        %v1567 = vsel %vm1566, %v1550, -inf
        %v1568 = vrot.slane %v1567, 4
        %v1569 = vmax.f32 %v1567, %v1568
        %v1570 = vrot.slane %v1569, 2
        %v1571 = vmax.f32 %v1569, %v1570
        %v1572 = vrot.slane %v1571, 1
        %v1573 = vmax.f32 %v1571, %v1572
        %v1574 = vsel %vm1566, %v1551, -inf
        %v1575 = vrot.slane %v1574, 4
        %v1576 = vmax.f32 %v1574, %v1575
        %v1577 = vrot.slane %v1576, 2
        %v1578 = vmax.f32 %v1576, %v1577
        %v1579 = vrot.slane %v1578, 1
        %v1580 = vmax.f32 %v1578, %v1579
        %v1581 = vsel %vm1566, %v1552, -inf
        %v1582 = vrot.slane %v1581, 4
        %v1583 = vmax.f32 %v1581, %v1582
        %v1584 = vrot.slane %v1583, 2
        %v1585 = vmax.f32 %v1583, %v1584
        %v1586 = vrot.slane %v1585, 1
        %v1587 = vmax.f32 %v1585, %v1586
        %v1588 = vsel %vm1566, %v1553, -inf
        %v1589 = vrot.slane %v1588, 4
        %v1590 = vmax.f32 %v1588, %v1589
        %v1591 = vrot.slane %v1590, 2
        %v1592 = vmax.f32 %v1590, %v1591
        %v1593 = vrot.slane %v1592, 1
        %v1594 = vmax.f32 %v1592, %v1593
        %v1595 = vsel %vm1566, %v1554, -inf
        %v1596 = vrot.slane %v1595, 4
        %v1597 = vmax.f32 %v1595, %v1596
        %v1598 = vrot.slane %v1597, 2
        %v1599 = vmax.f32 %v1597, %v1598
        %v1600 = vrot.slane %v1599, 1
        %v1601 = vmax.f32 %v1599, %v1600
        %v1602 = vsel %vm1566, %v1555, -inf
        %v1603 = vrot.slane %v1602, 4
        %v1604 = vmax.f32 %v1602, %v1603
        %v1605 = vrot.slane %v1604, 2
        %v1606 = vmax.f32 %v1604, %v1605
        %v1607 = vrot.slane %v1606, 1
        %v1608 = vmax.f32 %v1606, %v1607
        %v1609 = vsel %vm1566, %v1556, -inf
        %v1610 = vrot.slane %v1609, 4
        %v1611 = vmax.f32 %v1609, %v1610
        %v1612 = vrot.slane %v1611, 2
        %v1613 = vmax.f32 %v1611, %v1612
        %v1614 = vrot.slane %v1613, 1
        %v1615 = vmax.f32 %v1613, %v1614
        %v1616 = vsel %vm1566, %v1557, -inf
        %v1617 = vrot.slane %v1616, 4
        %v1618 = vmax.f32 %v1616, %v1617
        %v1619 = vrot.slane %v1618, 2
        %v1620 = vmax.f32 %v1618, %v1619
        %v1621 = vrot.slane %v1620, 1
        %v1622 = vmax.f32 %v1620, %v1621
        %v1623 = vsel %vm1566, %v1558, -inf
        %v1624 = vrot.slane %v1623, 4
        %v1625 = vmax.f32 %v1623, %v1624
        %v1626 = vrot.slane %v1625, 2
        %v1627 = vmax.f32 %v1625, %v1626
        %v1628 = vrot.slane %v1627, 1
        %v1629 = vmax.f32 %v1627, %v1628
        %v1630 = vsel %vm1566, %v1559, -inf
        %v1631 = vrot.slane %v1630, 4
        %v1632 = vmax.f32 %v1630, %v1631
        %v1633 = vrot.slane %v1632, 2
        %v1634 = vmax.f32 %v1632, %v1633
        %v1635 = vrot.slane %v1634, 1
        %v1636 = vmax.f32 %v1634, %v1635
        %v1637 = vsel %vm1566, %v1560, -inf
        %v1638 = vrot.slane %v1637, 4
        %v1639 = vmax.f32 %v1637, %v1638
        %v1640 = vrot.slane %v1639, 2
        %v1641 = vmax.f32 %v1639, %v1640
        %v1642 = vrot.slane %v1641, 1
        %v1643 = vmax.f32 %v1641, %v1642
        %v1644 = vsel %vm1566, %v1561, -inf
        %v1645 = vrot.slane %v1644, 4
        %v1646 = vmax.f32 %v1644, %v1645
        %v1647 = vrot.slane %v1646, 2
        %v1648 = vmax.f32 %v1646, %v1647
        %v1649 = vrot.slane %v1648, 1
        %v1650 = vmax.f32 %v1648, %v1649
        %v1651 = vsel %vm1566, %v1562, -inf
        %v1652 = vrot.slane %v1651, 4
        %v1653 = vmax.f32 %v1651, %v1652
        %v1654 = vrot.slane %v1653, 2
        %v1655 = vmax.f32 %v1653, %v1654
        %v1656 = vrot.slane %v1655, 1
        %v1657 = vmax.f32 %v1655, %v1656
        %v1658 = vsel %vm1566, %v1563, -inf
        %v1659 = vrot.slane %v1658, 4
        %v1660 = vmax.f32 %v1658, %v1659
        %v1661 = vrot.slane %v1660, 2
        %v1662 = vmax.f32 %v1660, %v1661
        %v1663 = vrot.slane %v1662, 1
        %v1664 = vmax.f32 %v1662, %v1663
        %v1665 = vsel %vm1566, %v1564, -inf
        %v1666 = vrot.slane %v1665, 4
        %v1667 = vmax.f32 %v1665, %v1666
        %v1668 = vrot.slane %v1667, 2
        %v1669 = vmax.f32 %v1667, %v1668
        %v1670 = vrot.slane %v1669, 1
        %v1671 = vmax.f32 %v1669, %v1670
        %v1672 = vsel %vm1566, %v1565, -inf
        %v1673 = vrot.slane %v1672, 4
        %v1674 = vmax.f32 %v1672, %v1673
        %v1675 = vrot.slane %v1674, 2
        %v1676 = vmax.f32 %v1674, %v1675
        %v1677 = vrot.slane %v1676, 1
        %v1678 = vmax.f32 %v1676, %v1677
        %v1679 = vmax.f32 %v1440, %v1573
        %v1680 = vmax.f32 %v1447, %v1580
        %v1681 = vmax.f32 %v1454, %v1587
        %v1682 = vmax.f32 %v1461, %v1594
        %v1683 = vmax.f32 %v1468, %v1601
        %v1684 = vmax.f32 %v1475, %v1608
        %v1685 = vmax.f32 %v1482, %v1615
        %v1686 = vmax.f32 %v1489, %v1622
        %v1687 = vmax.f32 %v1496, %v1629
        %v1688 = vmax.f32 %v1503, %v1636
        %v1689 = vmax.f32 %v1510, %v1643
        %v1690 = vmax.f32 %v1517, %v1650
        %v1691 = vmax.f32 %v1524, %v1657
        %v1692 = vmax.f32 %v1531, %v1664
        %v1693 = vmax.f32 %v1538, %v1671
        %v1694 = vmax.f32 %v1545, %v1678
        %v1695 = vpack.c.bf16 %v1679, %v1679
        %v1696 = vpack.c.bf16 %v1680, %v1680
        %v1697 = vpack.c.bf16 %v1681, %v1681
        %v1698 = vpack.c.bf16 %v1682, %v1682
        %v1699 = vpack.c.bf16 %v1683, %v1683
        %v1700 = vpack.c.bf16 %v1684, %v1684
        %v1701 = vpack.c.bf16 %v1685, %v1685
        %v1702 = vpack.c.bf16 %v1686, %v1686
        %v1703 = vpack.c.bf16 %v1687, %v1687
        %v1704 = vpack.c.bf16 %v1688, %v1688
        %v1705 = vpack.c.bf16 %v1689, %v1689
        %v1706 = vpack.c.bf16 %v1690, %v1690
        %v1707 = vpack.c.bf16 %v1691, %v1691
        %v1708 = vpack.c.bf16 %v1692, %v1692
        %v1709 = vpack.c.bf16 %v1693, %v1693
        %v1710 = vpack.c.bf16 %v1694, %v1694
        %v1711 = vld [vmem:[%s5] sm:$0xf]
        %v1712 = vld [vmem:[%s5 + $0x4] sm:$0xf]
        %v1713 = vld [vmem:[%s5 + $0x8] sm:$0xf]
        %v1714 = vld [vmem:[%s5 + $0xc] sm:$0xf]
        %v1715 = vld [vmem:[%s5 + $0x10] sm:$0xf]
        %v1716 = vld [vmem:[%s5 + $0x14] sm:$0xf]
        %v1717 = vld [vmem:[%s5 + $0x18] sm:$0xf]
        %v1718 = vld [vmem:[%s5 + $0x1c] sm:$0xf]
        %v1719 = vld [vmem:[%s5 + $0x20] sm:$0xf]
        %v1720 = vld [vmem:[%s5 + $0x24] sm:$0xf]
        %v1721 = vld [vmem:[%s5 + $0x28] sm:$0xf]
        %v1722 = vld [vmem:[%s5 + $0x2c] sm:$0xf]
        %v1723 = vld [vmem:[%s5 + $0x30] sm:$0xf]
        %v1724 = vld [vmem:[%s5 + $0x34] sm:$0xf]
        %v1725 = vld [vmem:[%s5 + $0x38] sm:$0xf]
        %v1726 = vld [vmem:[%s5 + $0x3c] sm:$0xf]
        %v1727 = vld [vmem:[%s6] sm:$0x1]
        %v1729 = vlaneseq
        %v1730 = vshrl.u32 %v1729, 7
        %v1731 = vsub.s32 0, %v1730
        %v1732 = vrot.slane %v1727, %v1731
        %v1750 = vunpack.c.l.b16 %v1695
        %v1751 = vunpack.c.l.b16 %v1696
        %v1752 = vunpack.c.l.b16 %v1697
        %v1753 = vunpack.c.l.b16 %v1698
        %v1754 = vunpack.c.l.b16 %v1699
        %v1755 = vunpack.c.l.b16 %v1700
        %v1756 = vunpack.c.l.b16 %v1701
        %v1757 = vunpack.c.l.b16 %v1702
        %v1758 = vunpack.c.l.b16 %v1703
        %v1759 = vunpack.c.l.b16 %v1704
        %v1760 = vunpack.c.l.b16 %v1705
        %v1761 = vunpack.c.l.b16 %v1706
        %v1762 = vunpack.c.l.b16 %v1707
        %v1763 = vunpack.c.l.b16 %v1708
        %v1764 = vunpack.c.l.b16 %v1709
        %v1765 = vunpack.c.l.b16 %v1710
        %vm1766 = vcmask 1041409
        %v1767 = vsel %vm1766, %v1751, %v1750
        %vm1768 = vcmask 1042434
        %v1769 = vsel %vm1768, %v1752, %v1767
        %vm1770 = vcmask 1043459
        %v1771 = vsel %vm1770, %v1753, %v1769
        %vm1772 = vcmask 1044484
        %v1773 = vsel %vm1772, %v1754, %v1771
        %vm1774 = vcmask 1045509
        %v1775 = vsel %vm1774, %v1755, %v1773
        %vm1776 = vcmask 1046534
        %v1777 = vsel %vm1776, %v1756, %v1775
        %vm1778 = vcmask 1047559
        %v1779 = vsel %vm1778, %v1757, %v1777
        %v1780 = vsel %vm1766, %v1759, %v1758
        %v1781 = vsel %vm1768, %v1760, %v1780
        %v1782 = vsel %vm1770, %v1761, %v1781
        %v1783 = vsel %vm1772, %v1762, %v1782
        %v1784 = vsel %vm1774, %v1763, %v1783
        %v1785 = vsel %vm1776, %v1764, %v1784
        %v1786 = vsel %vm1778, %v1765, %v1785
        %v1787 = vpack.c.b16 %v1786, %v1779
        %v1805 = vunpack.c.l.b16 %v1711
        %v1806 = vunpack.c.l.b16 %v1712
        %v1807 = vunpack.c.l.b16 %v1713
        %v1808 = vunpack.c.l.b16 %v1714
        %v1809 = vunpack.c.l.b16 %v1715
        %v1810 = vunpack.c.l.b16 %v1716
        %v1811 = vunpack.c.l.b16 %v1717
        %v1812 = vunpack.c.l.b16 %v1718
        %v1813 = vunpack.c.l.b16 %v1719
        %v1814 = vunpack.c.l.b16 %v1720
        %v1815 = vunpack.c.l.b16 %v1721
        %v1816 = vunpack.c.l.b16 %v1722
        %v1817 = vunpack.c.l.b16 %v1723
        %v1818 = vunpack.c.l.b16 %v1724
        %v1819 = vunpack.c.l.b16 %v1725
        %v1820 = vunpack.c.l.b16 %v1726
        %v1821 = vpack.c.b16 %v1806, %v1805
        %v1822 = vpack.c.b16 %v1808, %v1807
        %v1823 = vpack.c.b16 %v1810, %v1809
        %v1824 = vpack.c.b16 %v1812, %v1811
        %v1825 = vpack.c.b16 %v1814, %v1813
        %v1826 = vpack.c.b16 %v1816, %v1815
        %v1827 = vpack.c.b16 %v1818, %v1817
        %v1828 = vpack.c.b16 %v1820, %v1819
        %1837 = vmatprep.subr.bf16.mxu0 0
        %1838 = vmatpush1.bf16.msra.mxu0 %v1821
        %1839 = vmatprep.subr.bf16.mxu0 0
        %1840 = vmatpush1.bf16.msra.mxu0 %v1822
        %1841 = vmatprep.subr.bf16.mxu0 0
        %1842 = vmatpush1.bf16.msra.mxu0 %v1823
        %1843 = vmatprep.subr.bf16.mxu0 0
        %1844 = vmatpush1.bf16.msra.mxu0 %v1824
        %1845 = vmatprep.subr.bf16.mxu0 0
        %1846 = vmatpush1.bf16.msra.mxu0 %v1825
        %1847 = vmatprep.subr.bf16.mxu0 0
        %1848 = vmatpush1.bf16.msra.mxu0 %v1826
        %1849 = vmatprep.subr.bf16.mxu0 0
        %1850 = vmatpush1.bf16.msra.mxu0 %v1827
        %1851 = vmatprep.subr.bf16.mxu0 0
        %1852 = vmatpush1.bf16.msra.mxu0 %v1828
        %1853 = vmatprep.subr.bf16.mxu0 0
        %1854 = vmatpush1.bf16.msra.mxu0 0
        %1855 = vmatprep.subr.bf16.mxu0 0
        %1856 = vmatpush1.bf16.msra.mxu0 0
        %1857 = vmatprep.subr.bf16.mxu0 0
        %1858 = vmatpush1.bf16.msra.mxu0 0
        %1859 = vmatprep.subr.bf16.mxu0 0
        %1860 = vmatpush1.bf16.msra.mxu0 0
        %1861 = vmatprep.subr.bf16.mxu0 0
        %1862 = vmatpush1.bf16.msra.mxu0 0
        %1863 = vmatprep.subr.bf16.mxu0 0
        %1864 = vmatpush1.bf16.msra.mxu0 0
        %1865 = vmatprep.subr.bf16.mxu0 0
        %1866 = vmatpush1.bf16.msra.mxu0 0
        %1867 = vmatprep.subr.bf16.mxu0 0
        %1868 = vmatpush1.bf16.msra.mxu0 0
        %1869 = vmatprep.mubr.bf16.mxu0 0
        %1870 = vmatmul.mubr.bf16.gmra.mrb[0].mxu0 %v1787
        %v1871 = vpop.f32.mrb[0].mxu0
        %v1872 = vadd.f32 %v1732, %v1871
        %v1873 = vpop.f32.mrb[0].mxu0
        %v1874 = vpop.f32.mrb[0].mxu0
        %v1875 = vadd.f32 %v1732, %v1874
        %v1876 = vpop.f32.mrb[0].mxu0
        %1877 = vdwg.mxu0
        %v1878 = vpack.c.bf16 %v1875, %v1872
        %v1880 = vunpack.c.l.b16 %v1878
        %v1881 = vunpack.c.h.b16 %v1878
        %v1882 = vpack.c.b16 %v1880, %v1880
        %v1883 = vpack.c.b16 %v1881, %v1881
        %1886 = vst [vmem:[%s272] sm:$0xf] %v1882
        %1887 = vst [vmem:[%s272 + $0x4] sm:$0xf] %v1883
        %s1888 = sand.u32 %s181, 1
        %s1889 = scalar_lea.sflag [#allocation3], %s1888
        %s1890 = sand.u32 %s181, 1
        %s1891 = smul.addr %s1890, 8
        %s1892 = scalar_lea.vmem [#allocation2], %s1891
        // Predicated region
        $region49: #{tpu_custom_call.1} parent=47 // pred_check
          %p1893 = pneg %p191
        $region50: #{tpu_custom_call.1} parent=47 // pred_check_branch
          %1895 = sbr.rel (%p1893) target = $region52
        $region51: #{tpu_custom_call.1} parent=47 // pred_region
          %s1896 = smul.u32 2, %s21
          %s1898 = ssub.s32 128, 128
          %1899 = vsyncadd %s1889, %s1898
          %s1900 = smul.addr %s1896, 64
          %s1901 = scalar_lea.hbm %s7, %s1900
          %s1902 = sshll.u32 %s1892, 4
          %s1903 = int_to_ptr.vmem [resolvable:$true] %s1902
          %1908 = dma.vmem_to_hbm [thread:$0]  %s1903, 128, %s1901, %s1889, 64, 64, 4
        $region52: #{tpu_custom_call.1} parent=47 // pred_fallthru
          _
      $region48: #{tpu_custom_call.1} parent=5 // pred_fallthru
        _
      %p1909 = scmp.le.s32.totalorder 2, %s16
      // Predicated region
      $region53: #{tpu_custom_call.1} parent=5 // pred_check
        %p1910 = pneg %p1909
      $region54: #{tpu_custom_call.1} parent=5 // pred_check_branch
        %1912 = sbr.rel (%p1910) target = $region56
      $region55: #{tpu_custom_call.1} parent=5 // pred_region
        %s1913 = ssub.s32 %s16, 2
        // Predicated region
        $region57: #{tpu_custom_call.1} parent=55 // pred_check
          %p1914 = pneg %p197
        $region58: #{tpu_custom_call.1} parent=55 // pred_check_branch
          %1916 = sbr.rel (%p1914) target = $region60
        $region59: #{tpu_custom_call.1} parent=55 // pred_region
          %s1917 = sand.u32 %s182, 1
          %s1918 = scalar_lea.sflag [#allocation3], %s1917
          %s1919 = sand.u32 %s182, 1
          %s1920 = smul.addr %s1919, 8
          %s1921 = scalar_lea.vmem [#allocation2], %s1920
          %1922 = dma.done %s1918, 128
        $region60: #{tpu_custom_call.1} parent=55 // pred_fallthru
          _
      $region56: #{tpu_custom_call.1} parent=5 // pred_fallthru
        _
    $region6: #{tpu_custom_call.1} parent=1 // loop_footer
      %s20 = sadd.s32 1, %s16
    $region7: #{tpu_custom_call.1} parent=1 // loop_footer_branch
      %15 = sbr.rel target = $region3
    $region8: #{tpu_custom_call.1} parent=1 // loop_exit
      _
    %1923 = vsyncpa [#allocation3], 1
    %s1924 = scalar_lea.sflag [#allocation3], 1
    %1925 = vsyncpa %s1924, 1

</llo_original>
